<compile_context>
chip_gen: v7x
topology: tpu7x:2x2x1
jax: 0.10.0
libtpu: 0.0.40
codegen_flags: <defaults>
</compile_context>

<pallas_src>
import functools

import jax
import jax.numpy as jnp
from jax.experimental import pallas as pl
from jax.experimental.pallas import tpu as pltpu

_LANE = 128                     # TPU lane width; Cout padded to a multiple of this.
_COMPUTE_DTYPE = jnp.bfloat16   # MXU-native matmul input dtype (f32 accumulate).


def _round_up(v, m):
    return (v + m - 1) // m * m


# ----------------------------- Pallas kernels ------------------------------ #

def _accumulate_conv_taps(xph_ref, w_ref, *, k, stride, hq, ho, wo):
    """In-kernel k*k-tap conv reduction (no materialized im2col).

    xph_ref: (stride*stride*hq, wq, cin) phase-decomposed, spatially padded
             activation of ONE image; phase (a, b) occupies rows
             [(a*stride + b) * hq, (a*stride + b + 1) * hq).
    w_ref:   (k*k, cin, coutp) per-tap weights with BN scale pre-folded.
    Returns a (ho*wo, coutp) f32 accumulator.
    """
    cin = xph_ref.shape[-1]
    coutp = w_ref.shape[-1]
    acc = jnp.zeros((ho * wo, coutp), jnp.float32)
    for kh in range(k):
        for kw in range(k):
            ph, pw = kh % stride, kw % stride
            rh, rw = kh // stride, kw // stride
            r0 = (ph * stride + pw) * hq + rh
            tap = xph_ref[r0:r0 + ho, rw:rw + wo, :].reshape(ho * wo, cin)
            acc = acc + jnp.dot(tap, w_ref[kh * k + kw],
                                preferred_element_type=jnp.float32)
    return acc


def _conv_bn_kernel(xph_ref, w_ref, b_ref, o_ref, *, k, stride, hq, ho, wo, relu):
    acc = _accumulate_conv_taps(xph_ref, w_ref, k=k, stride=stride,
                                hq=hq, ho=ho, wo=wo)
    acc = acc + b_ref[...]                       # folded-BN bias
    if relu:
        acc = jnp.maximum(acc, 0.0)
    o_ref[...] = acc.astype(o_ref.dtype)


def _conv_bn_skip_relu_kernel(xph_ref, w_ref, b_ref, xs_ref, ws_ref, bs_ref,
                              o_ref, *, k, stride, hq, ho, wo):
    acc = _accumulate_conv_taps(xph_ref, w_ref, k=k, stride=stride,
                                hq=hq, ho=ho, wo=wo)
    acc = acc + b_ref[...]                       # folded-BN bias (conv2)
    # fused 1x1 skip conv + its folded-BN bias (hides under the conv2 MXU work)
    skip = jnp.dot(xs_ref[...], ws_ref[...], preferred_element_type=jnp.float32)
    skip = skip + bs_ref[...]
    o_ref[...] = jnp.maximum(acc + skip, 0.0).astype(o_ref.dtype)


# --------------------------- pallas_call wrapper ---------------------------- #

def _conv_bn_pallas(xph, w, bias, *, k, stride, hq, ho, wo, relu,
                    out_dtype, skip_args=None):
    n, phq, wq, cin = xph.shape
    coutp = w.shape[-1]
    m = ho * wo

    in_specs = [
        pl.BlockSpec((None, phq, wq, cin), lambda i: (i, 0, 0, 0)),
        pl.BlockSpec((k * k, cin, coutp), lambda i: (0, 0, 0)),
        pl.BlockSpec((1, coutp), lambda i: (0, 0)),
    ]
    args = [xph, w, bias]
    flops = 2 * n * m * (k * k * cin) * coutp
    bytes_accessed = (xph.size * xph.dtype.itemsize + w.size * w.dtype.itemsize
                      + bias.size * bias.dtype.itemsize
                      + n * m * coutp * jnp.dtype(out_dtype).itemsize)

    if skip_args is None:
        kernel = functools.partial(_conv_bn_kernel, k=k, stride=stride,
                                   hq=hq, ho=ho, wo=wo, relu=relu)
    else:
        xs, ws, bs = skip_args
        cin_s = xs.shape[-1]
        in_specs += [
            pl.BlockSpec((None, m, cin_s), lambda i: (i, 0, 0)),
            pl.BlockSpec((cin_s, coutp), lambda i: (0, 0)),
            pl.BlockSpec((1, coutp), lambda i: (0, 0)),
        ]
        args += [xs, ws, bs]
        kernel = functools.partial(_conv_bn_skip_relu_kernel, k=k, stride=stride,
                                   hq=hq, ho=ho, wo=wo)
        flops += 2 * n * m * cin_s * coutp
        bytes_accessed += (xs.size * xs.dtype.itemsize
                           + ws.size * ws.dtype.itemsize
                           + bs.size * bs.dtype.itemsize)

    return pl.pallas_call(
        kernel,
        out_shape=jax.ShapeDtypeStruct((n, m, coutp), out_dtype),
        grid_spec=pltpu.PrefetchScalarGridSpec(
            num_scalar_prefetch=0,
            grid=(n,),
            in_specs=in_specs,
            out_specs=pl.BlockSpec((None, m, coutp), lambda i: (i, 0, 0)),
        ),
        compiler_params=pltpu.CompilerParams(
            dimension_semantics=("parallel",),
            vmem_limit_bytes=48 * 1024 * 1024,   # safe under v7x's 64 MiB VMEM
        ),
        cost_estimate=pl.CostEstimate(flops=flops, transcendentals=0,
                                      bytes_accessed=bytes_accessed),
    )(*args)


# ------------------------------- glue (JAX) -------------------------------- #

def _fold_bn(gamma, beta, mean, var, eps=1e-5):
    scale = gamma / jnp.sqrt(var + eps)
    bias = beta - mean * scale
    return scale, bias


def _prep_conv_weight(w_oihw, scale, cin_p, cout_p, dtype):
    """(Cout, Cin, KH, KW) -> (KH*KW, cin_p, cout_p); BN scale folded into columns."""
    cout, cin, kh, kw = w_oihw.shape
    w = jnp.transpose(w_oihw, (2, 3, 1, 0)).reshape(kh * kw, cin, cout)
    w = w * scale.reshape(1, 1, cout)
    w = jnp.pad(w, ((0, 0), (0, cin_p - cin), (0, cout_p - cout)))
    return w.astype(dtype)


def _prep_bias(bias, cout_p):
    return jnp.pad(bias, (0, cout_p - bias.shape[0])).reshape(1, cout_p).astype(jnp.float32)


def _phase_decompose(x_nhwc, k, stride, padding, ho, wo, dtype):
    """Spatially pad + split into stride*stride phase grids (no k*k im2col blowup).

    Returns ((n, stride*stride*hq, wq, c), hq, wq); phase (a, b) element (r, s)
    corresponds to padded-input position (stride*r + a, stride*s + b), so each
    conv tap becomes a contiguous (ho, wo) window of one phase.
    """
    n, h, w, c = x_nhwc.shape
    hq = (k - 1) // stride + ho
    wq = (k - 1) // stride + wo
    hp, wp = stride * hq, stride * wq
    xp = jnp.pad(x_nhwc, ((0, 0), (padding, padding), (padding, padding), (0, 0)))
    xp = xp[:, :hp, :wp, :]                      # cropped rows/cols are never used
    xp = jnp.pad(xp, ((0, 0), (0, hp - xp.shape[1]), (0, wp - xp.shape[2]), (0, 0)))
    xp = xp.reshape(n, hq, stride, wq, stride, c)
    xp = jnp.transpose(xp, (0, 2, 4, 1, 3, 5))   # (n, a, b, hq, wq, c)
    return xp.reshape(n, stride * stride * hq, wq, c).astype(dtype), hq, wq


# ------------------------------ ConvBlock ----------------------------------- #

def init_conv_block_params(key, in_features, mid_features, enlargement=1, big_stride=2):
    assert enlargement == 1, "this script implements the 2-layer (enlargement != 4) variant"
    out_features = enlargement * mid_features
    k_c1, k_c2, k_sk, k_b1, k_b2, k_bs = jax.random.split(key, 6)

    def bn_params(c, k):
        kg, km, kv = jax.random.split(k, 3)
        gamma = 1.0 + 0.1 * jax.random.normal(kg, (c,), jnp.float32)
        beta = 0.05 * jnp.arange(c, dtype=jnp.float32)
        mean = 0.1 * jax.random.normal(km, (c,), jnp.float32)
        var = 1.0 + 0.1 * jax.random.uniform(kv, (c,), jnp.float32)
        return gamma, beta, mean, var

    return {
        "conv1_w": 0.1 * jax.random.normal(k_c1, (mid_features, in_features, 3, 3), jnp.float32),
        "conv2_w": 0.1 * jax.random.normal(k_c2, (out_features, mid_features, 3, 3), jnp.float32),
        "skip_w": 0.1 * jax.random.normal(k_sk, (out_features, in_features, 1, 1), jnp.float32),
        "bn1": bn_params(mid_features, k_b1),
        "bn2": bn_params(out_features, k_b2),
        "bn_skip": bn_params(out_features, k_bs),
        "big_stride": big_stride,
    }


def conv_block_forward(params, x_nchw, compute_dtype=_COMPUTE_DTYPE):
    """Forward pass of ConvBlock (2-layer variant). Input/Output: NCHW."""
    stride = params["big_stride"]
    x_nhwc = jnp.transpose(x_nchw, (0, 2, 3, 1))
    n, h, w, cin = x_nhwc.shape

    cmid = params["conv1_w"].shape[0]
    cout = params["conv2_w"].shape[0]
    cmid_p = _round_up(cmid, _LANE)      # lane-dense Cout of conv1 / Cin of conv2
    cout_p = _round_up(cout, _LANE)      # lane-dense Cout of conv2 / skip / output

    ho = (h + 2 - 3) // stride + 1
    wo = (w + 2 - 3) // stride + 1

    # ---- conv1 (3x3, stride=big_stride, pad=1) + bn1 + relu ----------------
    s1, b1 = _fold_bn(*params["bn1"])
    w1 = _prep_conv_weight(params["conv1_w"], s1, cin, cmid_p, compute_dtype)
    xph1, hq1, _ = _phase_decompose(x_nhwc, 3, stride, 1, ho, wo, compute_dtype)
    y1 = _conv_bn_pallas(xph1, w1, _prep_bias(b1, cmid_p), k=3, stride=stride,
                         hq=hq1, ho=ho, wo=wo, relu=True, out_dtype=compute_dtype)
    # y1: (n, ho*wo, cmid_p) bf16; padded channels are exactly zero.

    # ---- conv2 (3x3, s=1, pad=1) + bn2  +  fused 1x1 skip + bn + add + relu
    s2, b2 = _fold_bn(*params["bn2"])
    w2 = _prep_conv_weight(params["conv2_w"], s2, cmid_p, cout_p, compute_dtype)
    y1ph, hq2, _ = _phase_decompose(y1.reshape(n, ho, wo, cmid_p), 3, 1, 1,
                                    ho, wo, compute_dtype)

    ss, bsk = _fold_bn(*params["bn_skip"])
    ws = _prep_conv_weight(params["skip_w"], ss, cin, cout_p, compute_dtype)[0]
    xs = x_nhwc[:, ::stride, ::stride, :][:, :ho, :wo, :]
    xs = xs.reshape(n, ho * wo, cin).astype(compute_dtype)

    out = _conv_bn_pallas(y1ph, w2, _prep_bias(b2, cout_p), k=3, stride=1,
                          hq=hq2, ho=ho, wo=wo, relu=True, out_dtype=jnp.float32,
                          skip_args=(xs, ws, _prep_bias(bsk, cout_p)))

    out_nhwc = out[:, :, :cout].reshape(n, ho, wo, cout)
    return jnp.transpose(out_nhwc, (0, 3, 1, 2))        # back to NCHW


# ------------------------------ reference ----------------------------------- #

def _conv_block_ref(params, x_nchw):
    def conv(x, w, stride, pad):
        return jax.lax.conv_general_dilated(
            x, w, (stride, stride), [(pad, pad), (pad, pad)],
            dimension_numbers=("NCHW", "OIHW", "NCHW"))

    def bn(y, p, eps=1e-5):
        g, b, m, v = (a.reshape(1, -1, 1, 1) for a in p)
        return (y - m) / jnp.sqrt(v + eps) * g + b

    s = params["big_stride"]
    y = jax.nn.relu(bn(conv(x_nchw, params["conv1_w"], s, 1), params["bn1"]))
    y = bn(conv(y, params["conv2_w"], 1, 1), params["bn2"])
    sk = bn(conv(x_nchw, params["skip_w"], s, 0), params["bn_skip"])
    return jax.nn.relu(y + sk)


# --------------------------------- main ------------------------------------- #

if __name__ == "__main__":
    key = jax.random.PRNGKey(0)
    k_x, k_p = jax.random.split(key)

    in_features, mid_features = 4, 8
    x = jax.random.normal(k_x, (2, in_features, 16, 16), jnp.float32)  # NCHW

    params = init_conv_block_params(k_p, in_features, mid_features,
                                    enlargement=1, big_stride=2)

    out = jax.block_until_ready(conv_block_forward(params, x))
    ref = jax.block_until_ready(_conv_block_ref(params, x))

    assert out.shape == ref.shape == (2, mid_features, 8, 8)
    err = float(jnp.max(jnp.abs(out - ref)))
    scale = float(jnp.max(jnp.abs(ref)))
    # bf16 matmul inputs with f32 accumulation -> loose tolerance
    assert err <= 5e-2 * (1.0 + scale), f"max abs err {err} vs ref scale {scale}"

    print("KERNEL_OK")
</pallas_src>

<mosaic_0001>
module attributes {stable_mosaic.version = 11 : i64} {
  func.func @_conv_bn_kernel(%arg0: i32, %arg1: memref<1x36x9x4xbf16, #tpu.memory_space<vmem>>, %arg2: memref<9x4x128xbf16, #tpu.memory_space<vmem>>, %arg3: memref<1x128xf32, #tpu.memory_space<vmem>>, %arg4: memref<1x64x128xbf16, #tpu.memory_space<vmem>>) attributes {dimension_semantics = [#tpu.dimension_semantics<parallel>], iteration_bounds = array<i64: 2>, scalar_prefetch = 0 : i64, scratch_operands = 0 : i64, tpu.core_type = #tpu.core_type<tc>, window_params = [{transform_indices = @transform_0, window_bounds = array<i64: 1, 36, 9, 4>}, {pipeline_mode = #tpu.pipeline_mode<synchronous>, transform_indices = @transform_1, window_bounds = array<i64: 9, 4, 128>}, {pipeline_mode = #tpu.pipeline_mode<synchronous>, transform_indices = @transform_2, window_bounds = array<i64: 1, 128>}, {transform_indices = @transform_3, window_bounds = array<i64: 1, 64, 128>}]} {
    %cst = arith.constant 0.000000e+00 : f32
    %0 = vector.broadcast %cst : f32 to vector<64x128xf32>
    %c0 = arith.constant 0 : index
    %c0_0 = arith.constant 0 : index
    %c0_1 = arith.constant 0 : index
    %c0_2 = arith.constant 0 : index
    %1 = vector.load %arg1[%c0, %c0_0, %c0_1, %c0_2] : memref<1x36x9x4xbf16, #tpu.memory_space<vmem>>, vector<1x8x8x4xbf16>
    %2 = vector.shape_cast %1 : vector<1x8x8x4xbf16> to vector<8x8x4xbf16>
    %3 = vector.shape_cast %2 : vector<8x8x4xbf16> to vector<64x4xbf16>
    %c0_3 = arith.constant 0 : index
    %c0_4 = arith.constant 0 : index
    %c0_5 = arith.constant 0 : index
    %4 = vector.load %arg2[%c0_3, %c0_4, %c0_5] : memref<9x4x128xbf16, #tpu.memory_space<vmem>>, vector<1x4x128xbf16>
    %5 = vector.shape_cast %4 : vector<1x4x128xbf16> to vector<4x128xbf16>
    %cst_6 = arith.constant dense<0.000000e+00> : vector<64x128xf32>
    %6 = tpu.matmul %3, %5, %cst_6 {dimension_numbers = #tpu.dot_dimension_numbers<[1], [0], [0], [1], [0, 0, 1, 1], [], []>} : vector<64x4xbf16>, vector<4x128xbf16>, vector<64x128xf32> -> vector<64x128xf32>
    %7 = arith.addf %0, %6 : vector<64x128xf32>
    %c0_7 = arith.constant 0 : index
    %c9 = arith.constant 9 : index
    %c0_8 = arith.constant 0 : index
    %c0_9 = arith.constant 0 : index
    %8 = vector.load %arg1[%c0_7, %c9, %c0_8, %c0_9] : memref<1x36x9x4xbf16, #tpu.memory_space<vmem>>, vector<1x8x8x4xbf16>
    %9 = vector.shape_cast %8 : vector<1x8x8x4xbf16> to vector<8x8x4xbf16>
    %10 = vector.shape_cast %9 : vector<8x8x4xbf16> to vector<64x4xbf16>
    %c1 = arith.constant 1 : index
    %c0_10 = arith.constant 0 : index
    %c0_11 = arith.constant 0 : index
    %11 = vector.load %arg2[%c1, %c0_10, %c0_11] : memref<9x4x128xbf16, #tpu.memory_space<vmem>>, vector<1x4x128xbf16>
    %12 = vector.shape_cast %11 : vector<1x4x128xbf16> to vector<4x128xbf16>
    %cst_12 = arith.constant dense<0.000000e+00> : vector<64x128xf32>
    %13 = tpu.matmul %10, %12, %cst_12 {dimension_numbers = #tpu.dot_dimension_numbers<[1], [0], [0], [1], [0, 0, 1, 1], [], []>} : vector<64x4xbf16>, vector<4x128xbf16>, vector<64x128xf32> -> vector<64x128xf32>
    %14 = arith.addf %7, %13 : vector<64x128xf32>
    %c0_13 = arith.constant 0 : index
    %c0_14 = arith.constant 0 : index
    %c1_15 = arith.constant 1 : index
    %c0_16 = arith.constant 0 : index
    %15 = vector.load %arg1[%c0_13, %c0_14, %c1_15, %c0_16] : memref<1x36x9x4xbf16, #tpu.memory_space<vmem>>, vector<1x8x8x4xbf16>
    %16 = vector.shape_cast %15 : vector<1x8x8x4xbf16> to vector<8x8x4xbf16>
    %17 = vector.shape_cast %16 : vector<8x8x4xbf16> to vector<64x4xbf16>
    %c2 = arith.constant 2 : index
    %c0_17 = arith.constant 0 : index
    %c0_18 = arith.constant 0 : index
    %18 = vector.load %arg2[%c2, %c0_17, %c0_18] : memref<9x4x128xbf16, #tpu.memory_space<vmem>>, vector<1x4x128xbf16>
    %19 = vector.shape_cast %18 : vector<1x4x128xbf16> to vector<4x128xbf16>
    %cst_19 = arith.constant dense<0.000000e+00> : vector<64x128xf32>
    %20 = tpu.matmul %17, %19, %cst_19 {dimension_numbers = #tpu.dot_dimension_numbers<[1], [0], [0], [1], [0, 0, 1, 1], [], []>} : vector<64x4xbf16>, vector<4x128xbf16>, vector<64x128xf32> -> vector<64x128xf32>
    %21 = arith.addf %14, %20 : vector<64x128xf32>
    %c0_20 = arith.constant 0 : index
    %c18 = arith.constant 18 : index
    %c0_21 = arith.constant 0 : index
    %c0_22 = arith.constant 0 : index
    %22 = vector.load %arg1[%c0_20, %c18, %c0_21, %c0_22] : memref<1x36x9x4xbf16, #tpu.memory_space<vmem>>, vector<1x8x8x4xbf16>
    %23 = vector.shape_cast %22 : vector<1x8x8x4xbf16> to vector<8x8x4xbf16>
    %24 = vector.shape_cast %23 : vector<8x8x4xbf16> to vector<64x4xbf16>
    %c3 = arith.constant 3 : index
    %c0_23 = arith.constant 0 : index
    %c0_24 = arith.constant 0 : index
    %25 = vector.load %arg2[%c3, %c0_23, %c0_24] : memref<9x4x128xbf16, #tpu.memory_space<vmem>>, vector<1x4x128xbf16>
    %26 = vector.shape_cast %25 : vector<1x4x128xbf16> to vector<4x128xbf16>
    %cst_25 = arith.constant dense<0.000000e+00> : vector<64x128xf32>
    %27 = tpu.matmul %24, %26, %cst_25 {dimension_numbers = #tpu.dot_dimension_numbers<[1], [0], [0], [1], [0, 0, 1, 1], [], []>} : vector<64x4xbf16>, vector<4x128xbf16>, vector<64x128xf32> -> vector<64x128xf32>
    %28 = arith.addf %21, %27 : vector<64x128xf32>
    %c0_26 = arith.constant 0 : index
    %c27 = arith.constant 27 : index
    %c0_27 = arith.constant 0 : index
    %c0_28 = arith.constant 0 : index
    %29 = vector.load %arg1[%c0_26, %c27, %c0_27, %c0_28] : memref<1x36x9x4xbf16, #tpu.memory_space<vmem>>, vector<1x8x8x4xbf16>
    %30 = vector.shape_cast %29 : vector<1x8x8x4xbf16> to vector<8x8x4xbf16>
    %31 = vector.shape_cast %30 : vector<8x8x4xbf16> to vector<64x4xbf16>
    %c4 = arith.constant 4 : index
    %c0_29 = arith.constant 0 : index
    %c0_30 = arith.constant 0 : index
    %32 = vector.load %arg2[%c4, %c0_29, %c0_30] : memref<9x4x128xbf16, #tpu.memory_space<vmem>>, vector<1x4x128xbf16>
    %33 = vector.shape_cast %32 : vector<1x4x128xbf16> to vector<4x128xbf16>
    %cst_31 = arith.constant dense<0.000000e+00> : vector<64x128xf32>
    %34 = tpu.matmul %31, %33, %cst_31 {dimension_numbers = #tpu.dot_dimension_numbers<[1], [0], [0], [1], [0, 0, 1, 1], [], []>} : vector<64x4xbf16>, vector<4x128xbf16>, vector<64x128xf32> -> vector<64x128xf32>
    %35 = arith.addf %28, %34 : vector<64x128xf32>
    %c0_32 = arith.constant 0 : index
    %c18_33 = arith.constant 18 : index
    %c1_34 = arith.constant 1 : index
    %c0_35 = arith.constant 0 : index
    %36 = vector.load %arg1[%c0_32, %c18_33, %c1_34, %c0_35] : memref<1x36x9x4xbf16, #tpu.memory_space<vmem>>, vector<1x8x8x4xbf16>
    %37 = vector.shape_cast %36 : vector<1x8x8x4xbf16> to vector<8x8x4xbf16>
    %38 = vector.shape_cast %37 : vector<8x8x4xbf16> to vector<64x4xbf16>
    %c5 = arith.constant 5 : index
    %c0_36 = arith.constant 0 : index
    %c0_37 = arith.constant 0 : index
    %39 = vector.load %arg2[%c5, %c0_36, %c0_37] : memref<9x4x128xbf16, #tpu.memory_space<vmem>>, vector<1x4x128xbf16>
    %40 = vector.shape_cast %39 : vector<1x4x128xbf16> to vector<4x128xbf16>
    %cst_38 = arith.constant dense<0.000000e+00> : vector<64x128xf32>
    %41 = tpu.matmul %38, %40, %cst_38 {dimension_numbers = #tpu.dot_dimension_numbers<[1], [0], [0], [1], [0, 0, 1, 1], [], []>} : vector<64x4xbf16>, vector<4x128xbf16>, vector<64x128xf32> -> vector<64x128xf32>
    %42 = arith.addf %35, %41 : vector<64x128xf32>
    %c0_39 = arith.constant 0 : index
    %c1_40 = arith.constant 1 : index
    %c0_41 = arith.constant 0 : index
    %c0_42 = arith.constant 0 : index
    %43 = vector.load %arg1[%c0_39, %c1_40, %c0_41, %c0_42] : memref<1x36x9x4xbf16, #tpu.memory_space<vmem>>, vector<1x8x8x4xbf16>
    %44 = vector.shape_cast %43 : vector<1x8x8x4xbf16> to vector<8x8x4xbf16>
    %45 = vector.shape_cast %44 : vector<8x8x4xbf16> to vector<64x4xbf16>
    %c6 = arith.constant 6 : index
    %c0_43 = arith.constant 0 : index
    %c0_44 = arith.constant 0 : index
    %46 = vector.load %arg2[%c6, %c0_43, %c0_44] : memref<9x4x128xbf16, #tpu.memory_space<vmem>>, vector<1x4x128xbf16>
    %47 = vector.shape_cast %46 : vector<1x4x128xbf16> to vector<4x128xbf16>
    %cst_45 = arith.constant dense<0.000000e+00> : vector<64x128xf32>
    %48 = tpu.matmul %45, %47, %cst_45 {dimension_numbers = #tpu.dot_dimension_numbers<[1], [0], [0], [1], [0, 0, 1, 1], [], []>} : vector<64x4xbf16>, vector<4x128xbf16>, vector<64x128xf32> -> vector<64x128xf32>
    %49 = arith.addf %42, %48 : vector<64x128xf32>
    %c0_46 = arith.constant 0 : index
    %c10 = arith.constant 10 : index
    %c0_47 = arith.constant 0 : index
    %c0_48 = arith.constant 0 : index
    %50 = vector.load %arg1[%c0_46, %c10, %c0_47, %c0_48] : memref<1x36x9x4xbf16, #tpu.memory_space<vmem>>, vector<1x8x8x4xbf16>
    %51 = vector.shape_cast %50 : vector<1x8x8x4xbf16> to vector<8x8x4xbf16>
    %52 = vector.shape_cast %51 : vector<8x8x4xbf16> to vector<64x4xbf16>
    %c7 = arith.constant 7 : index
    %c0_49 = arith.constant 0 : index
    %c0_50 = arith.constant 0 : index
    %53 = vector.load %arg2[%c7, %c0_49, %c0_50] : memref<9x4x128xbf16, #tpu.memory_space<vmem>>, vector<1x4x128xbf16>
    %54 = vector.shape_cast %53 : vector<1x4x128xbf16> to vector<4x128xbf16>
    %cst_51 = arith.constant dense<0.000000e+00> : vector<64x128xf32>
    %55 = tpu.matmul %52, %54, %cst_51 {dimension_numbers = #tpu.dot_dimension_numbers<[1], [0], [0], [1], [0, 0, 1, 1], [], []>} : vector<64x4xbf16>, vector<4x128xbf16>, vector<64x128xf32> -> vector<64x128xf32>
    %56 = arith.addf %49, %55 : vector<64x128xf32>
    %c0_52 = arith.constant 0 : index
    %c1_53 = arith.constant 1 : index
    %c1_54 = arith.constant 1 : index
    %c0_55 = arith.constant 0 : index
    %57 = vector.load %arg1[%c0_52, %c1_53, %c1_54, %c0_55] : memref<1x36x9x4xbf16, #tpu.memory_space<vmem>>, vector<1x8x8x4xbf16>
    %58 = vector.shape_cast %57 : vector<1x8x8x4xbf16> to vector<8x8x4xbf16>
    %59 = vector.shape_cast %58 : vector<8x8x4xbf16> to vector<64x4xbf16>
    %c8 = arith.constant 8 : index
    %c0_56 = arith.constant 0 : index
    %c0_57 = arith.constant 0 : index
    %60 = vector.load %arg2[%c8, %c0_56, %c0_57] : memref<9x4x128xbf16, #tpu.memory_space<vmem>>, vector<1x4x128xbf16>
    %61 = vector.shape_cast %60 : vector<1x4x128xbf16> to vector<4x128xbf16>
    %cst_58 = arith.constant dense<0.000000e+00> : vector<64x128xf32>
    %62 = tpu.matmul %59, %61, %cst_58 {dimension_numbers = #tpu.dot_dimension_numbers<[1], [0], [0], [1], [0, 0, 1, 1], [], []>} : vector<64x4xbf16>, vector<4x128xbf16>, vector<64x128xf32> -> vector<64x128xf32>
    %63 = arith.addf %56, %62 : vector<64x128xf32>
    %c0_59 = arith.constant 0 : index
    %c0_60 = arith.constant 0 : index
    %64 = vector.load %arg3[%c0_59, %c0_60] : memref<1x128xf32, #tpu.memory_space<vmem>>, vector<1x128xf32>
    %65 = vector.broadcast %64 : vector<1x128xf32> to vector<64x128xf32>
    %66 = arith.addf %63, %65 : vector<64x128xf32>
    %cst_61 = arith.constant 0.000000e+00 : f32
    %67 = vector.broadcast %cst_61 : f32 to vector<64x128xf32>
    %68 = arith.maximumf %66, %67 : vector<64x128xf32>
    %69 = arith.truncf %68 : vector<64x128xf32> to vector<64x128xbf16>
    %c0_62 = arith.constant 0 : index
    %c0_63 = arith.constant 0 : index
    %c0_64 = arith.constant 0 : index
    %70 = vector.load %arg4[%c0_62, %c0_63, %c0_64] : memref<1x64x128xbf16, #tpu.memory_space<vmem>>, vector<1x64x128xbf16>
    %71 = vector.shape_cast %70 : vector<1x64x128xbf16> to vector<64x128xbf16>
    %72 = vector.shape_cast %69 : vector<64x128xbf16> to vector<1x64x128xbf16>
    tpu.vector_store %arg4[%c0_62, %c0_63, %c0_64], %72 {strides = array<i32>} : memref<1x64x128xbf16, #tpu.memory_space<vmem>>, vector<1x64x128xbf16>,
    return
  }
  func.func @transform_0(%arg0: i32) -> (i32, i32, i32, i32) {
    %c0_i32 = arith.constant 0 : i32
    %c0_i32_0 = arith.constant 0 : i32
    %c0_i32_1 = arith.constant 0 : i32
    %c0_i32_2 = arith.constant 0 : i32
    return %arg0, %c0_i32, %c0_i32_0, %c0_i32_1 : i32, i32, i32, i32
  }
  func.func @transform_1(%arg0: i32) -> (i32, i32, i32) {
    %c0_i32 = arith.constant 0 : i32
    %c0_i32_0 = arith.constant 0 : i32
    %c0_i32_1 = arith.constant 0 : i32
    %c0_i32_2 = arith.constant 0 : i32
    return %c0_i32, %c0_i32_0, %c0_i32_1 : i32, i32, i32
  }
  func.func @transform_2(%arg0: i32) -> (i32, i32) {
    %c0_i32 = arith.constant 0 : i32
    %c0_i32_0 = arith.constant 0 : i32
    %c0_i32_1 = arith.constant 0 : i32
    return %c0_i32, %c0_i32_0 : i32, i32
  }
  func.func @transform_3(%arg0: i32) -> (i32, i32, i32) {
    %c0_i32 = arith.constant 0 : i32
    %c0_i32_0 = arith.constant 0 : i32
    %c0_i32_1 = arith.constant 0 : i32
    return %arg0, %c0_i32, %c0_i32_0 : i32, i32, i32
  }
}

</mosaic_0001>

<llo_original>
// kernel: tpu_custom_call.1
$region0: #{tpu_custom_call.1}
  #allocation0 [shape = 'u32[]', space=smem, size = 0x4, offset = 0x4, fixed_abs, tag = 'smem constant byte address 0x4 - core index']
  #allocation1 [shape = 'u32[144,128]{1,0:T(1,128)}', space=vmem, size = 0x12000, scoped, tag = 'internal scratch']
  %s0 = inlined_call_operand.vmem [shape: bf16[2,36,9,4], index: 0, kind: input, shape index: {}]
  %s1 = inlined_call_operand.vmem [shape: bf16[9,4,128], index: 1, kind: input, shape index: {}]
  %s2 = inlined_call_operand.vmem [shape: f32[1,128], index: 2, kind: input, shape index: {}]
  %s3 = inlined_call_operand.hbm [shape: bf16[2,64,128], index: 3, kind: output, shape index: {}]
  %s4 = sld [smem:[#allocation0]]
  $region45: #{tpu_custom_call.1} parent=0
    _
  %s6 = ssub.s32 1, %s4
  %s7 = scalar_select 0, %s6, %s4
  $region1: #{tpu_custom_call.1} parent=0
    #allocation2 [shape = 'u8[32768]{0}', space=vmem, size = 0x8000, scoped, tag = 'output window, operand 0']
    #allocation3 [shape = 's32[2]{0}', space=sflag, size = 0x8, scoped, tag = 'scoped memory for tpu_custom_call.1']
    %8 = vsyncpa [#allocation3], 0
    %s9 = scalar_lea.sflag [#allocation3], 1
    %10 = vsyncpa %s9, 0
    loop: start=0, step=1, limit=4
    $region2: #{tpu_custom_call.1} parent=1 // loop_pre_header
      _
    $region3: #{tpu_custom_call.1} parent=1 // loop_header
      %s12 = sphi 0, %s16
      %p13 = scmp.ge.s32.totalorder %s12, 4
      %s22 = sphi 0, %s24
      %s25 = sphi 0, %s22
      %s26 = sphi 0, %s25
      %s42 = sphi 0, %s26
      %s46 = sphi 0, %s46
      %s48 = sphi 0, %s46
      %s49 = sphi 0, %s48
      %s63 = sphi 0, %s49
      %s67 = sphi 0, %s67
      %s69 = sphi 0, %s67
      %s70 = sphi 0, %s69
      %s84 = sphi 0, %s70
      %s90 = sphi 0, %s92
      %s93 = sphi 0, %s90
      %s94 = sphi 0, %s93
      %s110 = sphi 0, %s94
    $region4: #{tpu_custom_call.1} parent=1 // loop_header_branch
      %15 = sbr.rel (%p13) target = $region8
    $region5: #{tpu_custom_call.1} parent=1 // loop_body
      %s17 = ssub.s32 %s12, 1
      %s18 = ssub.s32 %s12, 2
      %s19 = sadd.s32 %s12, 1
      %s20 = ssub.s32 %s12, %s19
      %p21 = scmp.eq.s32.totalorder %s20, 0
      %s23 = sadd.s32 %s22, 1
      %s24 = scalar_select %p21, %s22, %s23
      %p27 = pneg %p21
      %p28 = scmp.eq.s32.totalorder %s12, 1
      %p29 = por %p27, %p28
      %p30 = scmp.ne.s32.totalorder %s22, %s25
      %p31 = scmp.eq.s32.totalorder %s12, 0
      %p32 = por %p30, %p31
      %p33 = scmp.ne.s32.totalorder %s22, %s25
      %p34 = scmp.eq.s32.totalorder %s17, 1
      %p35 = por %p33, %p34
      %p36 = scmp.ne.s32.totalorder %s25, %s26
      %p37 = scmp.eq.s32.totalorder %s17, 0
      %p38 = por %p36, %p37
      %p39 = scmp.ne.s32.totalorder %s25, %s26
      %p40 = scmp.eq.s32.totalorder %s18, 1
      %p41 = por %p39, %p40
      %p43 = scmp.ne.s32.totalorder %s26, %s42
      %p44 = scmp.eq.s32.totalorder %s18, 0
      %p45 = por %p43, %p44
      %s47 = sadd.s32 %s46, 1
      %p50 = scmp.eq.s32.totalorder %s12, 1
      %p51 = scmp.ne.s32.totalorder %s46, %s48
      %p52 = scmp.eq.s32.totalorder %s12, 0
      %p53 = por %p51, %p52
      %p54 = scmp.ne.s32.totalorder %s46, %s48
      %p55 = scmp.eq.s32.totalorder %s17, 1
      %p56 = por %p54, %p55
      %p57 = scmp.ne.s32.totalorder %s48, %s49
      %p58 = scmp.eq.s32.totalorder %s17, 0
      %p59 = por %p57, %p58
      %p60 = scmp.ne.s32.totalorder %s48, %s49
      %p61 = scmp.eq.s32.totalorder %s18, 1
      %p62 = por %p60, %p61
      %p64 = scmp.ne.s32.totalorder %s49, %s63
      %p65 = scmp.eq.s32.totalorder %s18, 0
      %p66 = por %p64, %p65
      %s68 = sadd.s32 %s67, 1
      %p71 = scmp.eq.s32.totalorder %s12, 1
      %p72 = scmp.ne.s32.totalorder %s67, %s69
      %p73 = scmp.eq.s32.totalorder %s12, 0
      %p74 = por %p72, %p73
      %p75 = scmp.ne.s32.totalorder %s67, %s69
      %p76 = scmp.eq.s32.totalorder %s17, 1
      %p77 = por %p75, %p76
      %p78 = scmp.ne.s32.totalorder %s69, %s70
      %p79 = scmp.eq.s32.totalorder %s17, 0
      %p80 = por %p78, %p79
      %p81 = scmp.ne.s32.totalorder %s69, %s70
      %p82 = scmp.eq.s32.totalorder %s18, 1
      %p83 = por %p81, %p82
      %p85 = scmp.ne.s32.totalorder %s70, %s84
      %p86 = scmp.eq.s32.totalorder %s18, 0
      %p87 = por %p85, %p86
      %s88 = ssub.s32 %s12, %s19
      %p89 = scmp.eq.s32.totalorder %s88, 0
      %s91 = sadd.s32 %s90, 1
      %s92 = scalar_select %p89, %s90, %s91
      %p95 = pneg %p89
      %p96 = scmp.eq.s32.totalorder %s12, 1
      %p97 = por %p95, %p96
      %p98 = scmp.ne.s32.totalorder %s90, %s93
      %p99 = scmp.eq.s32.totalorder %s12, 0
      %p100 = por %p98, %p99
      %p101 = scmp.ne.s32.totalorder %s90, %s93
      %p102 = scmp.eq.s32.totalorder %s17, 1
      %p103 = por %p101, %p102
      %p104 = scmp.ne.s32.totalorder %s93, %s94
      %p105 = scmp.eq.s32.totalorder %s17, 0
      %p106 = por %p104, %p105
      %p107 = scmp.ne.s32.totalorder %s93, %s94
      %p108 = scmp.eq.s32.totalorder %s18, 1
      %p109 = por %p107, %p108
      %p111 = scmp.ne.s32.totalorder %s94, %s110
      %p112 = scmp.eq.s32.totalorder %s18, 0
      %p113 = por %p111, %p112
      %p114 = scmp.le.s32.totalorder 1, %s12
      %p115 = scmp.lt.s32.totalorder %s12, 3
      %p116 = pnand %p114, %p115
      %p117 = pneg %p116
      // Predicated region
      $region9: #{tpu_custom_call.1} parent=5 // pred_check
        _
      $region10: #{tpu_custom_call.1} parent=5 // pred_check_branch
        %119 = sbr.rel (%p116) target = $region12
      $region11: #{tpu_custom_call.1} parent=5 // pred_region
        %s120 = ssub.s32 %s12, 1
        // Predicated region
        $region13: #{tpu_custom_call.1} parent=11 // pred_check
          %p121 = pneg %p59
        $region14: #{tpu_custom_call.1} parent=11 // pred_check_branch
          %123 = sbr.rel (%p121) target = $region16
        $region15: #{tpu_custom_call.1} parent=11 // pred_region
          _
        $region16: #{tpu_custom_call.1} parent=11 // pred_fallthru
          _
        // Predicated region
        $region17: #{tpu_custom_call.1} parent=11 // pred_check
          %p124 = pneg %p80
        $region18: #{tpu_custom_call.1} parent=11 // pred_check_branch
          %126 = sbr.rel (%p124) target = $region20
        $region19: #{tpu_custom_call.1} parent=11 // pred_region
          _
        $region20: #{tpu_custom_call.1} parent=11 // pred_fallthru
          _
      $region12: #{tpu_custom_call.1} parent=5 // pred_fallthru
        _
      %p127 = scmp.lt.s32.totalorder %s12, 2
      // Predicated region
      $region21: #{tpu_custom_call.1} parent=5 // pred_check
        %p128 = pneg %p127
      $region22: #{tpu_custom_call.1} parent=5 // pred_check_branch
        %130 = sbr.rel (%p128) target = $region24
      $region23: #{tpu_custom_call.1} parent=5 // pred_region
        // Predicated region
        $region25: #{tpu_custom_call.1} parent=23 // pred_check
          %p131 = pneg %p32
        $region26: #{tpu_custom_call.1} parent=23 // pred_check_branch
          %133 = sbr.rel (%p131) target = $region28
        $region27: #{tpu_custom_call.1} parent=23 // pred_region
          %p134 = scmp.lt.s32.totalorder %s12, 1
          %s135 = scalar_select %p134, %s12, 1
          %s136 = smul.addr %s135, 72
          %s137 = smul.addr %s136, 4
          %s138 = scalar_lea.vmem %s0, %s137
        $region28: #{tpu_custom_call.1} parent=23 // pred_fallthru
          _
      $region24: #{tpu_custom_call.1} parent=5 // pred_fallthru
        _
      %p139 = scmp.le.s32.totalorder 1, %s12
      %p140 = scmp.lt.s32.totalorder %s12, 3
      %p141 = pnand %p139, %p140
      %p142 = pneg %p141
      // Predicated region
      $region29: #{tpu_custom_call.1} parent=5 // pred_check
        _
      $region30: #{tpu_custom_call.1} parent=5 // pred_check_branch
        %144 = sbr.rel (%p141) target = $region32
      $region31: #{tpu_custom_call.1} parent=5 // pred_region
        %s145 = ssub.s32 %s12, 1
        %p146 = scmp.lt.s32.totalorder %s17, 1
        %s147 = scalar_select %p146, %s17, 1
        %s148 = smul.addr %s147, 72
        %s149 = smul.addr %s148, 4
        %s150 = scalar_lea.vmem %s0, %s149
        %p151 = pneg %p38
        %p152 = pneg %p35
        %p153 = pneg %p59
        %p154 = pneg %p56
        %p155 = pneg %p80
        %p156 = pneg %p77
        %p157 = pneg %p106
        %p158 = pneg %p103
        %s159 = sand.u32 %s93, 1
        %s160 = scalar_lea.sflag [#allocation3], %s159
        %s161 = sand.u32 %s93, 1
        %s162 = smul.addr %s161, 32
        %s163 = scalar_lea.vmem [#allocation2], %s162
        %p164 = scmp.lt.s32.totalorder %s17, 1
        %s165 = scalar_select %p164, %s17, 1
        %s166 = smul.addr %s165, 72
        %s167 = smul.addr %s166, 4
        %s168 = scalar_lea.vmem %s0, %s167
        %v170 = vld [vmem:[%s168] sm:$0xf]
        %v171 = vld [vmem:[%s168 + $0x8] sm:$0xf]
        %v172 = vld [vmem:[%s168 + $0x10] sm:$0xf]
        %v173 = vld [vmem:[%s168 + $0x18] sm:$0xf]
        %v174 = vld [vmem:[%s168 + $0x20] sm:$0xf]
        %v175 = vld [vmem:[%s168 + $0x28] sm:$0xf]
        %v176 = vld [vmem:[%s168 + $0x30] sm:$0xf]
        %v177 = vld [vmem:[%s168 + $0x38] sm:$0xf]
        %v178 = vld [vmem:[%s1] sm:$0x3]
        %s179 = scalar_lea.vmem %s168, 72
        %v180 = vld [vmem:[%s179] sm:$0xf]
        %v181 = vld [vmem:[%s179 + $0x8] sm:$0xf]
        %v182 = vld [vmem:[%s179 + $0x10] sm:$0xf]
        %v183 = vld [vmem:[%s179 + $0x18] sm:$0xf]
        %v184 = vld [vmem:[%s179 + $0x20] sm:$0xf]
        %v185 = vld [vmem:[%s179 + $0x28] sm:$0xf]
        %v186 = vld [vmem:[%s179 + $0x30] sm:$0xf]
        %v187 = vld [vmem:[%s179 + $0x38] sm:$0xf]
        %s188 = scalar_lea.vmem %s1, 2
        %v189 = vld [vmem:[%s188] sm:$0x3]
        %v198 = vunpack.c.l.b16 %v180
        %v199 = vunpack.c.l.b16 %v181
        %v200 = vunpack.c.l.b16 %v182
        %v201 = vunpack.c.l.b16 %v183
        %v202 = vunpack.c.l.b16 %v184
        %v203 = vunpack.c.l.b16 %v185
        %v204 = vunpack.c.l.b16 %v186
        %v205 = vunpack.c.l.b16 %v187
        %v206 = vpack.c.b16 %v199, %v198
        %v207 = vpack.c.b16 %v201, %v200
        %v208 = vpack.c.b16 %v203, %v202
        %v209 = vpack.c.b16 %v205, %v204
        %vm210 = vcmask 31744
        %v212 = vsel %vm210, %v206, 0
        %v215 = vsel %vm210, %v207, 0
        %v218 = vsel %vm210, %v208, 0
        %v221 = vsel %vm210, %v209, 0
        %vm223 = vcmask 1041408
        %v225 = vsel %vm223, %v189, 0
        %227 = vmatprep.subr.bf16.mxu0 0
        %228 = vmatpush1.bf16.msra.mxu0 %v225
        %229 = vmatprep.subr.bf16.mxu0 0
        %230 = vmatpush1.bf16.msra.mxu0 0
        %231 = vmatprep.subr.bf16.mxu0 0
        %232 = vmatpush1.bf16.msra.mxu0 0
        %233 = vmatprep.subr.bf16.mxu0 0
        %234 = vmatpush1.bf16.msra.mxu0 0
        %235 = vmatprep.subr.bf16.mxu0 0
        %236 = vmatpush1.bf16.msra.mxu0 0
        %237 = vmatprep.subr.bf16.mxu0 0
        %238 = vmatpush1.bf16.msra.mxu0 0
        %239 = vmatprep.subr.bf16.mxu0 0
        %240 = vmatpush1.bf16.msra.mxu0 0
        %241 = vmatprep.subr.bf16.mxu0 0
        %242 = vmatpush1.bf16.msra.mxu0 0
        %243 = vmatprep.subr.bf16.mxu0 0
        %244 = vmatpush1.bf16.msra.mxu0 0
        %245 = vmatprep.subr.bf16.mxu0 0
        %246 = vmatpush1.bf16.msra.mxu0 0
        %247 = vmatprep.subr.bf16.mxu0 0
        %248 = vmatpush1.bf16.msra.mxu0 0
        %249 = vmatprep.subr.bf16.mxu0 0
        %250 = vmatpush1.bf16.msra.mxu0 0
        %251 = vmatprep.subr.bf16.mxu0 0
        %252 = vmatpush1.bf16.msra.mxu0 0
        %253 = vmatprep.subr.bf16.mxu0 0
        %254 = vmatpush1.bf16.msra.mxu0 0
        %255 = vmatprep.subr.bf16.mxu0 0
        %256 = vmatpush1.bf16.msra.mxu0 0
        %257 = vmatprep.subr.bf16.mxu0 0
        %258 = vmatpush1.bf16.msra.mxu0 0
        %259 = vmatprep.mubr.bf16.mxu0 0
        %260 = vmatmul.mubr.bf16.gmra.mrb[0].mxu0 %v212
        %v261 = vpop.f32.mrb[0].mxu0
        %v262 = vadd.f32 0.0, %v261
        %v263 = vpop.f32.mrb[0].mxu0
        %v264 = vpop.f32.mrb[0].mxu0
        %v265 = vadd.f32 0.0, %v264
        %v266 = vpop.f32.mrb[0].mxu0
        %267 = vmatprep.mubr.bf16.mxu0 0
        %268 = vmatmul.mubr.bf16.gmra.mrb[0].mxu0 %v215
        %v269 = vpop.f32.mrb[0].mxu0
        %v270 = vadd.f32 0.0, %v269
        %v271 = vpop.f32.mrb[0].mxu0
        %v272 = vpop.f32.mrb[0].mxu0
        %v273 = vadd.f32 0.0, %v272
        %v274 = vpop.f32.mrb[0].mxu0
        %275 = vmatprep.mubr.bf16.mxu0 0
        %276 = vmatmul.mubr.bf16.gmra.mrb[0].mxu0 %v218
        %v277 = vpop.f32.mrb[0].mxu0
        %v278 = vadd.f32 0.0, %v277
        %v279 = vpop.f32.mrb[0].mxu0
        %v280 = vpop.f32.mrb[0].mxu0
        %v281 = vadd.f32 0.0, %v280
        %v282 = vpop.f32.mrb[0].mxu0
        %283 = vmatprep.mubr.bf16.mxu0 0
        %284 = vmatmul.mubr.bf16.gmra.mrb[0].mxu0 %v221
        %v285 = vpop.f32.mrb[0].mxu0
        %v286 = vadd.f32 0.0, %v285
        %v287 = vpop.f32.mrb[0].mxu0
        %v288 = vpop.f32.mrb[0].mxu0
        %v289 = vadd.f32 0.0, %v288
        %v290 = vpop.f32.mrb[0].mxu0
        %291 = vdwg.mxu0
        %v300 = vunpack.c.l.b16 %v170
        %v301 = vunpack.c.l.b16 %v171
        %v302 = vunpack.c.l.b16 %v172
        %v303 = vunpack.c.l.b16 %v173
        %v304 = vunpack.c.l.b16 %v174
        %v305 = vunpack.c.l.b16 %v175
        %v306 = vunpack.c.l.b16 %v176
        %v307 = vunpack.c.l.b16 %v177
        %v308 = vpack.c.b16 %v301, %v300
        %v309 = vpack.c.b16 %v303, %v302
        %v310 = vpack.c.b16 %v305, %v304
        %v311 = vpack.c.b16 %v307, %v306
        %v313 = vsel %vm210, %v308, 0
        %v316 = vsel %vm210, %v309, 0
        %v319 = vsel %vm210, %v310, 0
        %v322 = vsel %vm210, %v311, 0
        %v325 = vsel %vm223, %v178, 0
        %327 = vmatprep.subr.bf16.mxu0 0
        %328 = vmatpush1.bf16.msra.mxu0 %v325
        %329 = vmatprep.subr.bf16.mxu0 0
        %330 = vmatpush1.bf16.msra.mxu0 0
        %331 = vmatprep.subr.bf16.mxu0 0
        %332 = vmatpush1.bf16.msra.mxu0 0
        %333 = vmatprep.subr.bf16.mxu0 0
        %334 = vmatpush1.bf16.msra.mxu0 0
        %335 = vmatprep.subr.bf16.mxu0 0
        %336 = vmatpush1.bf16.msra.mxu0 0
        %337 = vmatprep.subr.bf16.mxu0 0
        %338 = vmatpush1.bf16.msra.mxu0 0
        %339 = vmatprep.subr.bf16.mxu0 0
        %340 = vmatpush1.bf16.msra.mxu0 0
        %341 = vmatprep.subr.bf16.mxu0 0
        %342 = vmatpush1.bf16.msra.mxu0 0
        %343 = vmatprep.subr.bf16.mxu0 0
        %344 = vmatpush1.bf16.msra.mxu0 0
        %345 = vmatprep.subr.bf16.mxu0 0
        %346 = vmatpush1.bf16.msra.mxu0 0
        %347 = vmatprep.subr.bf16.mxu0 0
        %348 = vmatpush1.bf16.msra.mxu0 0
        %349 = vmatprep.subr.bf16.mxu0 0
        %350 = vmatpush1.bf16.msra.mxu0 0
        %351 = vmatprep.subr.bf16.mxu0 0
        %352 = vmatpush1.bf16.msra.mxu0 0
        %353 = vmatprep.subr.bf16.mxu0 0
        %354 = vmatpush1.bf16.msra.mxu0 0
        %355 = vmatprep.subr.bf16.mxu0 0
        %356 = vmatpush1.bf16.msra.mxu0 0
        %357 = vmatprep.subr.bf16.mxu0 0
        %358 = vmatpush1.bf16.msra.mxu0 0
        %359 = vmatprep.mubr.bf16.mxu0 0
        %360 = vmatmul.mubr.bf16.gmra.mrb[0].mxu0 %v313
        %v361 = vpop.f32.mrb[0].mxu0
        %v362 = vadd.f32 %v262, %v361
        %v363 = vpop.f32.mrb[0].mxu0
        %v364 = vpop.f32.mrb[0].mxu0
        %v365 = vadd.f32 %v265, %v364
        %v366 = vpop.f32.mrb[0].mxu0
        %367 = vmatprep.mubr.bf16.mxu0 0
        %368 = vmatmul.mubr.bf16.gmra.mrb[0].mxu0 %v316
        %v369 = vpop.f32.mrb[0].mxu0
        %v370 = vadd.f32 %v270, %v369
        %v371 = vpop.f32.mrb[0].mxu0
        %v372 = vpop.f32.mrb[0].mxu0
        %v373 = vadd.f32 %v273, %v372
        %v374 = vpop.f32.mrb[0].mxu0
        %375 = vmatprep.mubr.bf16.mxu0 0
        %376 = vmatmul.mubr.bf16.gmra.mrb[0].mxu0 %v319
        %v377 = vpop.f32.mrb[0].mxu0
        %v378 = vadd.f32 %v278, %v377
        %v379 = vpop.f32.mrb[0].mxu0
        %v380 = vpop.f32.mrb[0].mxu0
        %v381 = vadd.f32 %v281, %v380
        %v382 = vpop.f32.mrb[0].mxu0
        %383 = vmatprep.mubr.bf16.mxu0 0
        %384 = vmatmul.mubr.bf16.gmra.mrb[0].mxu0 %v322
        %v385 = vpop.f32.mrb[0].mxu0
        %v386 = vadd.f32 %v286, %v385
        %v387 = vpop.f32.mrb[0].mxu0
        %v388 = vpop.f32.mrb[0].mxu0
        %v389 = vadd.f32 %v289, %v388
        %v390 = vpop.f32.mrb[0].mxu0
        %391 = vdwg.mxu0
        %v392 = vld [vmem:[%s168] sm:$0xf]
        %v393 = vld [vmem:[%s168 + $0x4] sm:$0x1]
        %v394 = vld [vmem:[%s168 + $0x8] sm:$0xf]
        %v395 = vld [vmem:[%s168 + $0xc] sm:$0x1]
        %v396 = vld [vmem:[%s168 + $0x10] sm:$0xf]
        %v397 = vld [vmem:[%s168 + $0x14] sm:$0x1]
        %v398 = vld [vmem:[%s168 + $0x18] sm:$0xf]
        %v399 = vld [vmem:[%s168 + $0x1c] sm:$0x1]
        %v400 = vld [vmem:[%s168 + $0x20] sm:$0xf]
        %v401 = vld [vmem:[%s168 + $0x24] sm:$0x1]
        %v402 = vld [vmem:[%s168 + $0x28] sm:$0xf]
        %v403 = vld [vmem:[%s168 + $0x2c] sm:$0x1]
        %v404 = vld [vmem:[%s168 + $0x30] sm:$0xf]
        %v405 = vld [vmem:[%s168 + $0x34] sm:$0x1]
        %v406 = vld [vmem:[%s168 + $0x38] sm:$0xf]
        %v407 = vld [vmem:[%s168 + $0x3c] sm:$0x1]
        %vm408 = vsmask.f32 3328
        %vm409 = vsmask.f32 7440
        %vm410 = vmor %vm408, %vm409
        %v412 = vshrl.u32 %v392, 16
        %v414 = vrot.slane %v412, 4
        %v415 = vshll.u32 %v392, 16
        %v417 = vrot.slane %v415, 5
        %v418 = vor.u32 %v414, %v417
        %v419 = vrot.slane %v418, 4
        %v421 = vshll.u32 %v393, 16
        %v423 = vrot.slane %v421, 5
        %v424 = vsel %vm410, %v419, %v423
        %v426 = vshrl.u32 %v394, 16
        %v428 = vrot.slane %v426, 4
        %v429 = vshll.u32 %v394, 16
        %v431 = vrot.slane %v429, 5
        %v432 = vor.u32 %v428, %v431
        %v433 = vrot.slane %v432, 4
        %v435 = vshll.u32 %v395, 16
        %v437 = vrot.slane %v435, 5
        %v438 = vsel %vm410, %v433, %v437
        %v440 = vshrl.u32 %v396, 16
        %v442 = vrot.slane %v440, 4
        %v443 = vshll.u32 %v396, 16
        %v445 = vrot.slane %v443, 5
        %v446 = vor.u32 %v442, %v445
        %v447 = vrot.slane %v446, 4
        %v449 = vshll.u32 %v397, 16
        %v451 = vrot.slane %v449, 5
        %v452 = vsel %vm410, %v447, %v451
        %v454 = vshrl.u32 %v398, 16
        %v456 = vrot.slane %v454, 4
        %v457 = vshll.u32 %v398, 16
        %v459 = vrot.slane %v457, 5
        %v460 = vor.u32 %v456, %v459
        %v461 = vrot.slane %v460, 4
        %v463 = vshll.u32 %v399, 16
        %v465 = vrot.slane %v463, 5
        %v466 = vsel %vm410, %v461, %v465
        %v468 = vshrl.u32 %v400, 16
        %v470 = vrot.slane %v468, 4
        %v471 = vshll.u32 %v400, 16
        %v473 = vrot.slane %v471, 5
        %v474 = vor.u32 %v470, %v473
        %v475 = vrot.slane %v474, 4
        %v477 = vshll.u32 %v401, 16
        %v479 = vrot.slane %v477, 5
        %v480 = vsel %vm410, %v475, %v479
        %v482 = vshrl.u32 %v402, 16
        %v484 = vrot.slane %v482, 4
        %v485 = vshll.u32 %v402, 16
        %v487 = vrot.slane %v485, 5
        %v488 = vor.u32 %v484, %v487
        %v489 = vrot.slane %v488, 4
        %v491 = vshll.u32 %v403, 16
        %v493 = vrot.slane %v491, 5
        %v494 = vsel %vm410, %v489, %v493
        %v496 = vshrl.u32 %v404, 16
        %v498 = vrot.slane %v496, 4
        %v499 = vshll.u32 %v404, 16
        %v501 = vrot.slane %v499, 5
        %v502 = vor.u32 %v498, %v501
        %v503 = vrot.slane %v502, 4
        %v505 = vshll.u32 %v405, 16
        %v507 = vrot.slane %v505, 5
        %v508 = vsel %vm410, %v503, %v507
        %v510 = vshrl.u32 %v406, 16
        %v512 = vrot.slane %v510, 4
        %v513 = vshll.u32 %v406, 16
        %v515 = vrot.slane %v513, 5
        %v516 = vor.u32 %v512, %v515
        %v517 = vrot.slane %v516, 4
        %v519 = vshll.u32 %v407, 16
        %v521 = vrot.slane %v519, 5
        %v522 = vsel %vm410, %v517, %v521
        %s523 = scalar_lea.vmem %s1, 4
        %v524 = vld [vmem:[%s523] sm:$0x3]
        %v525 = vunpack.c.l.b16 %v424
        %v526 = vunpack.c.l.b16 %v438
        %v527 = vunpack.c.l.b16 %v452
        %v528 = vunpack.c.l.b16 %v466
        %v529 = vunpack.c.l.b16 %v480
        %v530 = vunpack.c.l.b16 %v494
        %v531 = vunpack.c.l.b16 %v508
        %v532 = vunpack.c.l.b16 %v522
        %v533 = vpack.c.b16 %v526, %v525
        %v534 = vpack.c.b16 %v528, %v527
        %v535 = vpack.c.b16 %v530, %v529
        %v536 = vpack.c.b16 %v532, %v531
        %v538 = vsel %vm210, %v533, 0
        %v541 = vsel %vm210, %v534, 0
        %v544 = vsel %vm210, %v535, 0
        %v547 = vsel %vm210, %v536, 0
        %v550 = vsel %vm223, %v524, 0
        %552 = vmatprep.subr.bf16.mxu0 0
        %553 = vmatpush1.bf16.msra.mxu0 %v550
        %554 = vmatprep.subr.bf16.mxu0 0
        %555 = vmatpush1.bf16.msra.mxu0 0
        %556 = vmatprep.subr.bf16.mxu0 0
        %557 = vmatpush1.bf16.msra.mxu0 0
        %558 = vmatprep.subr.bf16.mxu0 0
        %559 = vmatpush1.bf16.msra.mxu0 0
        %560 = vmatprep.subr.bf16.mxu0 0
        %561 = vmatpush1.bf16.msra.mxu0 0
        %562 = vmatprep.subr.bf16.mxu0 0
        %563 = vmatpush1.bf16.msra.mxu0 0
        %564 = vmatprep.subr.bf16.mxu0 0
        %565 = vmatpush1.bf16.msra.mxu0 0
        %566 = vmatprep.subr.bf16.mxu0 0
        %567 = vmatpush1.bf16.msra.mxu0 0
        %568 = vmatprep.subr.bf16.mxu0 0
        %569 = vmatpush1.bf16.msra.mxu0 0
        %570 = vmatprep.subr.bf16.mxu0 0
        %571 = vmatpush1.bf16.msra.mxu0 0
        %572 = vmatprep.subr.bf16.mxu0 0
        %573 = vmatpush1.bf16.msra.mxu0 0
        %574 = vmatprep.subr.bf16.mxu0 0
        %575 = vmatpush1.bf16.msra.mxu0 0
        %576 = vmatprep.subr.bf16.mxu0 0
        %577 = vmatpush1.bf16.msra.mxu0 0
        %578 = vmatprep.subr.bf16.mxu0 0
        %579 = vmatpush1.bf16.msra.mxu0 0
        %580 = vmatprep.subr.bf16.mxu0 0
        %581 = vmatpush1.bf16.msra.mxu0 0
        %582 = vmatprep.subr.bf16.mxu0 0
        %583 = vmatpush1.bf16.msra.mxu0 0
        %584 = vmatprep.mubr.bf16.mxu0 0
        %585 = vmatmul.mubr.bf16.gmra.mrb[0].mxu0 %v538
        %v586 = vpop.f32.mrb[0].mxu0
        %v587 = vadd.f32 0.0, %v586
        %v588 = vpop.f32.mrb[0].mxu0
        %v589 = vpop.f32.mrb[0].mxu0
        %v590 = vadd.f32 0.0, %v589
        %v591 = vpop.f32.mrb[0].mxu0
        %592 = vmatprep.mubr.bf16.mxu0 0
        %593 = vmatmul.mubr.bf16.gmra.mrb[0].mxu0 %v541
        %v594 = vpop.f32.mrb[0].mxu0
        %v595 = vadd.f32 0.0, %v594
        %v596 = vpop.f32.mrb[0].mxu0
        %v597 = vpop.f32.mrb[0].mxu0
        %v598 = vadd.f32 0.0, %v597
        %v599 = vpop.f32.mrb[0].mxu0
        %600 = vmatprep.mubr.bf16.mxu0 0
        %601 = vmatmul.mubr.bf16.gmra.mrb[0].mxu0 %v544
        %v602 = vpop.f32.mrb[0].mxu0
        %v603 = vadd.f32 0.0, %v602
        %v604 = vpop.f32.mrb[0].mxu0
        %v605 = vpop.f32.mrb[0].mxu0
        %v606 = vadd.f32 0.0, %v605
        %v607 = vpop.f32.mrb[0].mxu0
        %608 = vmatprep.mubr.bf16.mxu0 0
        %609 = vmatmul.mubr.bf16.gmra.mrb[0].mxu0 %v547
        %v610 = vpop.f32.mrb[0].mxu0
        %v611 = vadd.f32 0.0, %v610
        %v612 = vpop.f32.mrb[0].mxu0
        %v613 = vpop.f32.mrb[0].mxu0
        %v614 = vadd.f32 0.0, %v613
        %v615 = vpop.f32.mrb[0].mxu0
        %616 = vdwg.mxu0
        %v617 = vadd.f32 %v362, %v587
        %v618 = vadd.f32 %v365, %v590
        %v619 = vadd.f32 %v370, %v595
        %v620 = vadd.f32 %v373, %v598
        %v621 = vadd.f32 %v378, %v603
        %v622 = vadd.f32 %v381, %v606
        %v623 = vadd.f32 %v386, %v611
        %v624 = vadd.f32 %v389, %v614
        %s625 = scalar_lea.vmem %s168, 144
        %v626 = vld [vmem:[%s625] sm:$0xf]
        %v627 = vld [vmem:[%s625 + $0x8] sm:$0xf]
        %v628 = vld [vmem:[%s625 + $0x10] sm:$0xf]
        %v629 = vld [vmem:[%s625 + $0x18] sm:$0xf]
        %v630 = vld [vmem:[%s625 + $0x20] sm:$0xf]
        %v631 = vld [vmem:[%s625 + $0x28] sm:$0xf]
        %v632 = vld [vmem:[%s625 + $0x30] sm:$0xf]
        %v633 = vld [vmem:[%s625 + $0x38] sm:$0xf]
        %s634 = scalar_lea.vmem %s1, 6
        %v635 = vld [vmem:[%s634] sm:$0x3]
        %v644 = vunpack.c.l.b16 %v626
        %v645 = vunpack.c.l.b16 %v627
        %v646 = vunpack.c.l.b16 %v628
        %v647 = vunpack.c.l.b16 %v629
        %v648 = vunpack.c.l.b16 %v630
        %v649 = vunpack.c.l.b16 %v631
        %v650 = vunpack.c.l.b16 %v632
        %v651 = vunpack.c.l.b16 %v633
        %v652 = vpack.c.b16 %v645, %v644
        %v653 = vpack.c.b16 %v647, %v646
        %v654 = vpack.c.b16 %v649, %v648
        %v655 = vpack.c.b16 %v651, %v650
        %v657 = vsel %vm210, %v652, 0
        %v660 = vsel %vm210, %v653, 0
        %v663 = vsel %vm210, %v654, 0
        %v666 = vsel %vm210, %v655, 0
        %v669 = vsel %vm223, %v635, 0
        %671 = vmatprep.subr.bf16.mxu0 0
        %672 = vmatpush1.bf16.msra.mxu0 %v669
        %673 = vmatprep.subr.bf16.mxu0 0
        %674 = vmatpush1.bf16.msra.mxu0 0
        %675 = vmatprep.subr.bf16.mxu0 0
        %676 = vmatpush1.bf16.msra.mxu0 0
        %677 = vmatprep.subr.bf16.mxu0 0
        %678 = vmatpush1.bf16.msra.mxu0 0
        %679 = vmatprep.subr.bf16.mxu0 0
        %680 = vmatpush1.bf16.msra.mxu0 0
        %681 = vmatprep.subr.bf16.mxu0 0
        %682 = vmatpush1.bf16.msra.mxu0 0
        %683 = vmatprep.subr.bf16.mxu0 0
        %684 = vmatpush1.bf16.msra.mxu0 0
        %685 = vmatprep.subr.bf16.mxu0 0
        %686 = vmatpush1.bf16.msra.mxu0 0
        %687 = vmatprep.subr.bf16.mxu0 0
        %688 = vmatpush1.bf16.msra.mxu0 0
        %689 = vmatprep.subr.bf16.mxu0 0
        %690 = vmatpush1.bf16.msra.mxu0 0
        %691 = vmatprep.subr.bf16.mxu0 0
        %692 = vmatpush1.bf16.msra.mxu0 0
        %693 = vmatprep.subr.bf16.mxu0 0
        %694 = vmatpush1.bf16.msra.mxu0 0
        %695 = vmatprep.subr.bf16.mxu0 0
        %696 = vmatpush1.bf16.msra.mxu0 0
        %697 = vmatprep.subr.bf16.mxu0 0
        %698 = vmatpush1.bf16.msra.mxu0 0
        %699 = vmatprep.subr.bf16.mxu0 0
        %700 = vmatpush1.bf16.msra.mxu0 0
        %701 = vmatprep.subr.bf16.mxu0 0
        %702 = vmatpush1.bf16.msra.mxu0 0
        %703 = vmatprep.mubr.bf16.mxu0 0
        %704 = vmatmul.mubr.bf16.gmra.mrb[0].mxu0 %v657
        %v705 = vpop.f32.mrb[0].mxu0
        %v706 = vadd.f32 0.0, %v705
        %v707 = vpop.f32.mrb[0].mxu0
        %v708 = vpop.f32.mrb[0].mxu0
        %v709 = vadd.f32 0.0, %v708
        %v710 = vpop.f32.mrb[0].mxu0
        %711 = vmatprep.mubr.bf16.mxu0 0
        %712 = vmatmul.mubr.bf16.gmra.mrb[0].mxu0 %v660
        %v713 = vpop.f32.mrb[0].mxu0
        %v714 = vadd.f32 0.0, %v713
        %v715 = vpop.f32.mrb[0].mxu0
        %v716 = vpop.f32.mrb[0].mxu0
        %v717 = vadd.f32 0.0, %v716
        %v718 = vpop.f32.mrb[0].mxu0
        %719 = vmatprep.mubr.bf16.mxu0 0
        %720 = vmatmul.mubr.bf16.gmra.mrb[0].mxu0 %v663
        %v721 = vpop.f32.mrb[0].mxu0
        %v722 = vadd.f32 0.0, %v721
        %v723 = vpop.f32.mrb[0].mxu0
        %v724 = vpop.f32.mrb[0].mxu0
        %v725 = vadd.f32 0.0, %v724
        %v726 = vpop.f32.mrb[0].mxu0
        %727 = vmatprep.mubr.bf16.mxu0 0
        %728 = vmatmul.mubr.bf16.gmra.mrb[0].mxu0 %v666
        %v729 = vpop.f32.mrb[0].mxu0
        %v730 = vadd.f32 0.0, %v729
        %v731 = vpop.f32.mrb[0].mxu0
        %v732 = vpop.f32.mrb[0].mxu0
        %v733 = vadd.f32 0.0, %v732
        %v734 = vpop.f32.mrb[0].mxu0
        %735 = vdwg.mxu0
        %v736 = vadd.f32 %v617, %v706
        %v737 = vadd.f32 %v618, %v709
        %v738 = vadd.f32 %v619, %v714
        %v739 = vadd.f32 %v620, %v717
        %v740 = vadd.f32 %v621, %v722
        %v741 = vadd.f32 %v622, %v725
        %v742 = vadd.f32 %v623, %v730
        %v743 = vadd.f32 %v624, %v733
        %s744 = scalar_lea.vmem %s168, 216
        %v745 = vld [vmem:[%s744] sm:$0xf]
        %v746 = vld [vmem:[%s744 + $0x8] sm:$0xf]
        %v747 = vld [vmem:[%s744 + $0x10] sm:$0xf]
        %v748 = vld [vmem:[%s744 + $0x18] sm:$0xf]
        %v749 = vld [vmem:[%s744 + $0x20] sm:$0xf]
        %v750 = vld [vmem:[%s744 + $0x28] sm:$0xf]
        %v751 = vld [vmem:[%s744 + $0x30] sm:$0xf]
        %v752 = vld [vmem:[%s744 + $0x38] sm:$0xf]
        %s753 = scalar_lea.vmem %s1, 8
        %v754 = vld [vmem:[%s753] sm:$0x3]
        %v763 = vunpack.c.l.b16 %v745
        %v764 = vunpack.c.l.b16 %v746
        %v765 = vunpack.c.l.b16 %v747
        %v766 = vunpack.c.l.b16 %v748
        %v767 = vunpack.c.l.b16 %v749
        %v768 = vunpack.c.l.b16 %v750
        %v769 = vunpack.c.l.b16 %v751
        %v770 = vunpack.c.l.b16 %v752
        %v771 = vpack.c.b16 %v764, %v763
        %v772 = vpack.c.b16 %v766, %v765
        %v773 = vpack.c.b16 %v768, %v767
        %v774 = vpack.c.b16 %v770, %v769
        %v776 = vsel %vm210, %v771, 0
        %v779 = vsel %vm210, %v772, 0
        %v782 = vsel %vm210, %v773, 0
        %v785 = vsel %vm210, %v774, 0
        %v788 = vsel %vm223, %v754, 0
        %790 = vmatprep.subr.bf16.mxu0 0
        %791 = vmatpush1.bf16.msra.mxu0 %v788
        %792 = vmatprep.subr.bf16.mxu0 0
        %793 = vmatpush1.bf16.msra.mxu0 0
        %794 = vmatprep.subr.bf16.mxu0 0
        %795 = vmatpush1.bf16.msra.mxu0 0
        %796 = vmatprep.subr.bf16.mxu0 0
        %797 = vmatpush1.bf16.msra.mxu0 0
        %798 = vmatprep.subr.bf16.mxu0 0
        %799 = vmatpush1.bf16.msra.mxu0 0
        %800 = vmatprep.subr.bf16.mxu0 0
        %801 = vmatpush1.bf16.msra.mxu0 0
        %802 = vmatprep.subr.bf16.mxu0 0
        %803 = vmatpush1.bf16.msra.mxu0 0
        %804 = vmatprep.subr.bf16.mxu0 0
        %805 = vmatpush1.bf16.msra.mxu0 0
        %806 = vmatprep.subr.bf16.mxu0 0
        %807 = vmatpush1.bf16.msra.mxu0 0
        %808 = vmatprep.subr.bf16.mxu0 0
        %809 = vmatpush1.bf16.msra.mxu0 0
        %810 = vmatprep.subr.bf16.mxu0 0
        %811 = vmatpush1.bf16.msra.mxu0 0
        %812 = vmatprep.subr.bf16.mxu0 0
        %813 = vmatpush1.bf16.msra.mxu0 0
        %814 = vmatprep.subr.bf16.mxu0 0
        %815 = vmatpush1.bf16.msra.mxu0 0
        %816 = vmatprep.subr.bf16.mxu0 0
        %817 = vmatpush1.bf16.msra.mxu0 0
        %818 = vmatprep.subr.bf16.mxu0 0
        %819 = vmatpush1.bf16.msra.mxu0 0
        %820 = vmatprep.subr.bf16.mxu0 0
        %821 = vmatpush1.bf16.msra.mxu0 0
        %822 = vmatprep.mubr.bf16.mxu0 0
        %823 = vmatmul.mubr.bf16.gmra.mrb[0].mxu0 %v776
        %v824 = vpop.f32.mrb[0].mxu0
        %v825 = vadd.f32 0.0, %v824
        %v826 = vpop.f32.mrb[0].mxu0
        %v827 = vpop.f32.mrb[0].mxu0
        %v828 = vadd.f32 0.0, %v827
        %v829 = vpop.f32.mrb[0].mxu0
        %830 = vmatprep.mubr.bf16.mxu0 0
        %831 = vmatmul.mubr.bf16.gmra.mrb[0].mxu0 %v779
        %v832 = vpop.f32.mrb[0].mxu0
        %v833 = vadd.f32 0.0, %v832
        %v834 = vpop.f32.mrb[0].mxu0
        %v835 = vpop.f32.mrb[0].mxu0
        %v836 = vadd.f32 0.0, %v835
        %v837 = vpop.f32.mrb[0].mxu0
        %838 = vmatprep.mubr.bf16.mxu0 0
        %839 = vmatmul.mubr.bf16.gmra.mrb[0].mxu0 %v782
        %v840 = vpop.f32.mrb[0].mxu0
        %v841 = vadd.f32 0.0, %v840
        %v842 = vpop.f32.mrb[0].mxu0
        %v843 = vpop.f32.mrb[0].mxu0
        %v844 = vadd.f32 0.0, %v843
        %v845 = vpop.f32.mrb[0].mxu0
        %846 = vmatprep.mubr.bf16.mxu0 0
        %847 = vmatmul.mubr.bf16.gmra.mrb[0].mxu0 %v785
        %v848 = vpop.f32.mrb[0].mxu0
        %v849 = vadd.f32 0.0, %v848
        %v850 = vpop.f32.mrb[0].mxu0
        %v851 = vpop.f32.mrb[0].mxu0
        %v852 = vadd.f32 0.0, %v851
        %v853 = vpop.f32.mrb[0].mxu0
        %854 = vdwg.mxu0
        %v855 = vadd.f32 %v736, %v825
        %v856 = vadd.f32 %v737, %v828
        %v857 = vadd.f32 %v738, %v833
        %v858 = vadd.f32 %v739, %v836
        %v859 = vadd.f32 %v740, %v841
        %v860 = vadd.f32 %v741, %v844
        %v861 = vadd.f32 %v742, %v849
        %v862 = vadd.f32 %v743, %v852
        %v863 = vld [vmem:[%s625] sm:$0xf]
        %v864 = vld [vmem:[%s625 + $0x4] sm:$0x1]
        %v865 = vld [vmem:[%s625 + $0x8] sm:$0xf]
        %v866 = vld [vmem:[%s625 + $0xc] sm:$0x1]
        %v867 = vld [vmem:[%s625 + $0x10] sm:$0xf]
        %v868 = vld [vmem:[%s625 + $0x14] sm:$0x1]
        %v869 = vld [vmem:[%s625 + $0x18] sm:$0xf]
        %v870 = vld [vmem:[%s625 + $0x1c] sm:$0x1]
        %v871 = vld [vmem:[%s625 + $0x20] sm:$0xf]
        %v872 = vld [vmem:[%s625 + $0x24] sm:$0x1]
        %v873 = vld [vmem:[%s625 + $0x28] sm:$0xf]
        %v874 = vld [vmem:[%s625 + $0x2c] sm:$0x1]
        %v875 = vld [vmem:[%s625 + $0x30] sm:$0xf]
        %v876 = vld [vmem:[%s625 + $0x34] sm:$0x1]
        %v877 = vld [vmem:[%s625 + $0x38] sm:$0xf]
        %v878 = vld [vmem:[%s625 + $0x3c] sm:$0x1]
        %v880 = vshrl.u32 %v863, 16
        %v882 = vrot.slane %v880, 4
        %v883 = vshll.u32 %v863, 16
        %v885 = vrot.slane %v883, 5
        %v886 = vor.u32 %v882, %v885
        %v887 = vrot.slane %v886, 4
        %v889 = vshll.u32 %v864, 16
        %v891 = vrot.slane %v889, 5
        %v892 = vsel %vm410, %v887, %v891
        %v894 = vshrl.u32 %v865, 16
        %v896 = vrot.slane %v894, 4
        %v897 = vshll.u32 %v865, 16
        %v899 = vrot.slane %v897, 5
        %v900 = vor.u32 %v896, %v899
        %v901 = vrot.slane %v900, 4
        %v903 = vshll.u32 %v866, 16
        %v905 = vrot.slane %v903, 5
        %v906 = vsel %vm410, %v901, %v905
        %v908 = vshrl.u32 %v867, 16
        %v910 = vrot.slane %v908, 4
        %v911 = vshll.u32 %v867, 16
        %v913 = vrot.slane %v911, 5
        %v914 = vor.u32 %v910, %v913
        %v915 = vrot.slane %v914, 4
        %v917 = vshll.u32 %v868, 16
        %v919 = vrot.slane %v917, 5
        %v920 = vsel %vm410, %v915, %v919
        %v922 = vshrl.u32 %v869, 16
        %v924 = vrot.slane %v922, 4
        %v925 = vshll.u32 %v869, 16
        %v927 = vrot.slane %v925, 5
        %v928 = vor.u32 %v924, %v927
        %v929 = vrot.slane %v928, 4
        %v931 = vshll.u32 %v870, 16
        %v933 = vrot.slane %v931, 5
        %v934 = vsel %vm410, %v929, %v933
        %v936 = vshrl.u32 %v871, 16
        %v938 = vrot.slane %v936, 4
        %v939 = vshll.u32 %v871, 16
        %v941 = vrot.slane %v939, 5
        %v942 = vor.u32 %v938, %v941
        %v943 = vrot.slane %v942, 4
        %v945 = vshll.u32 %v872, 16
        %v947 = vrot.slane %v945, 5
        %v948 = vsel %vm410, %v943, %v947
        %v950 = vshrl.u32 %v873, 16
        %v952 = vrot.slane %v950, 4
        %v953 = vshll.u32 %v873, 16
        %v955 = vrot.slane %v953, 5
        %v956 = vor.u32 %v952, %v955
        %v957 = vrot.slane %v956, 4
        %v959 = vshll.u32 %v874, 16
        %v961 = vrot.slane %v959, 5
        %v962 = vsel %vm410, %v957, %v961
        %v964 = vshrl.u32 %v875, 16
        %v966 = vrot.slane %v964, 4
        %v967 = vshll.u32 %v875, 16
        %v969 = vrot.slane %v967, 5
        %v970 = vor.u32 %v966, %v969
        %v971 = vrot.slane %v970, 4
        %v973 = vshll.u32 %v876, 16
        %v975 = vrot.slane %v973, 5
        %v976 = vsel %vm410, %v971, %v975
        %v978 = vshrl.u32 %v877, 16
        %v980 = vrot.slane %v978, 4
        %v981 = vshll.u32 %v877, 16
        %v983 = vrot.slane %v981, 5
        %v984 = vor.u32 %v980, %v983
        %v985 = vrot.slane %v984, 4
        %v987 = vshll.u32 %v878, 16
        %v989 = vrot.slane %v987, 5
        %v990 = vsel %vm410, %v985, %v989
        %s991 = scalar_lea.vmem %s1, 10
        %v992 = vld [vmem:[%s991] sm:$0x3]
        %v993 = vunpack.c.l.b16 %v892
        %v994 = vunpack.c.l.b16 %v906
        %v995 = vunpack.c.l.b16 %v920
        %v996 = vunpack.c.l.b16 %v934
        %v997 = vunpack.c.l.b16 %v948
        %v998 = vunpack.c.l.b16 %v962
        %v999 = vunpack.c.l.b16 %v976
        %v1000 = vunpack.c.l.b16 %v990
        %v1001 = vpack.c.b16 %v994, %v993
        %v1002 = vpack.c.b16 %v996, %v995
        %v1003 = vpack.c.b16 %v998, %v997
        %v1004 = vpack.c.b16 %v1000, %v999
        %v1006 = vsel %vm210, %v1001, 0
        %v1009 = vsel %vm210, %v1002, 0
        %v1012 = vsel %vm210, %v1003, 0
        %v1015 = vsel %vm210, %v1004, 0
        %v1018 = vsel %vm223, %v992, 0
        %1020 = vmatprep.subr.bf16.mxu0 0
        %1021 = vmatpush1.bf16.msra.mxu0 %v1018
        %1022 = vmatprep.subr.bf16.mxu0 0
        %1023 = vmatpush1.bf16.msra.mxu0 0
        %1024 = vmatprep.subr.bf16.mxu0 0
        %1025 = vmatpush1.bf16.msra.mxu0 0
        %1026 = vmatprep.subr.bf16.mxu0 0
        %1027 = vmatpush1.bf16.msra.mxu0 0
        %1028 = vmatprep.subr.bf16.mxu0 0
        %1029 = vmatpush1.bf16.msra.mxu0 0
        %1030 = vmatprep.subr.bf16.mxu0 0
        %1031 = vmatpush1.bf16.msra.mxu0 0
        %1032 = vmatprep.subr.bf16.mxu0 0
        %1033 = vmatpush1.bf16.msra.mxu0 0
        %1034 = vmatprep.subr.bf16.mxu0 0
        %1035 = vmatpush1.bf16.msra.mxu0 0
        %1036 = vmatprep.subr.bf16.mxu0 0
        %1037 = vmatpush1.bf16.msra.mxu0 0
        %1038 = vmatprep.subr.bf16.mxu0 0
        %1039 = vmatpush1.bf16.msra.mxu0 0
        %1040 = vmatprep.subr.bf16.mxu0 0
        %1041 = vmatpush1.bf16.msra.mxu0 0
        %1042 = vmatprep.subr.bf16.mxu0 0
        %1043 = vmatpush1.bf16.msra.mxu0 0
        %1044 = vmatprep.subr.bf16.mxu0 0
        %1045 = vmatpush1.bf16.msra.mxu0 0
        %1046 = vmatprep.subr.bf16.mxu0 0
        %1047 = vmatpush1.bf16.msra.mxu0 0
        %1048 = vmatprep.subr.bf16.mxu0 0
        %1049 = vmatpush1.bf16.msra.mxu0 0
        %1050 = vmatprep.subr.bf16.mxu0 0
        %1051 = vmatpush1.bf16.msra.mxu0 0
        %1052 = vmatprep.mubr.bf16.mxu0 0
        %1053 = vmatmul.mubr.bf16.gmra.mrb[0].mxu0 %v1006
        %v1054 = vpop.f32.mrb[0].mxu0
        %v1055 = vadd.f32 0.0, %v1054
        %v1056 = vpop.f32.mrb[0].mxu0
        %v1057 = vpop.f32.mrb[0].mxu0
        %v1058 = vadd.f32 0.0, %v1057
        %v1059 = vpop.f32.mrb[0].mxu0
        %1060 = vmatprep.mubr.bf16.mxu0 0
        %1061 = vmatmul.mubr.bf16.gmra.mrb[0].mxu0 %v1009
        %v1062 = vpop.f32.mrb[0].mxu0
        %v1063 = vadd.f32 0.0, %v1062
        %v1064 = vpop.f32.mrb[0].mxu0
        %v1065 = vpop.f32.mrb[0].mxu0
        %v1066 = vadd.f32 0.0, %v1065
        %v1067 = vpop.f32.mrb[0].mxu0
        %1068 = vmatprep.mubr.bf16.mxu0 0
        %1069 = vmatmul.mubr.bf16.gmra.mrb[0].mxu0 %v1012
        %v1070 = vpop.f32.mrb[0].mxu0
        %v1071 = vadd.f32 0.0, %v1070
        %v1072 = vpop.f32.mrb[0].mxu0
        %v1073 = vpop.f32.mrb[0].mxu0
        %v1074 = vadd.f32 0.0, %v1073
        %v1075 = vpop.f32.mrb[0].mxu0
        %1076 = vmatprep.mubr.bf16.mxu0 0
        %1077 = vmatmul.mubr.bf16.gmra.mrb[0].mxu0 %v1015
        %v1078 = vpop.f32.mrb[0].mxu0
        %v1079 = vadd.f32 0.0, %v1078
        %v1080 = vpop.f32.mrb[0].mxu0
        %v1081 = vpop.f32.mrb[0].mxu0
        %v1082 = vadd.f32 0.0, %v1081
        %v1083 = vpop.f32.mrb[0].mxu0
        %1084 = vdwg.mxu0
        %v1085 = vadd.f32 %v855, %v1055
        %v1086 = vadd.f32 %v856, %v1058
        %v1087 = vadd.f32 %v857, %v1063
        %v1088 = vadd.f32 %v858, %v1066
        %v1089 = vadd.f32 %v859, %v1071
        %v1090 = vadd.f32 %v860, %v1074
        %v1091 = vadd.f32 %v861, %v1079
        %v1092 = vadd.f32 %v862, %v1082
        %s1093 = scalar_lea.vmem %s168, 8
        %v1094 = vld [vmem:[%s1093] sm:$0xf]
        %v1095 = vld [vmem:[%s1093 + $0x8] sm:$0xf]
        %v1096 = vld [vmem:[%s1093 + $0x10] sm:$0xf]
        %v1097 = vld [vmem:[%s1093 + $0x18] sm:$0xf]
        %v1098 = vld [vmem:[%s1093 + $0x20] sm:$0xf]
        %v1099 = vld [vmem:[%s1093 + $0x28] sm:$0xf]
        %v1100 = vld [vmem:[%s1093 + $0x30] sm:$0xf]
        %v1101 = vld [vmem:[%s1093 + $0x38] sm:$0xf]
        %s1102 = scalar_lea.vmem %s1, 12
        %v1103 = vld [vmem:[%s1102] sm:$0x3]
        %v1112 = vunpack.c.l.b16 %v1094
        %v1113 = vunpack.c.l.b16 %v1095
        %v1114 = vunpack.c.l.b16 %v1096
        %v1115 = vunpack.c.l.b16 %v1097
        %v1116 = vunpack.c.l.b16 %v1098
        %v1117 = vunpack.c.l.b16 %v1099
        %v1118 = vunpack.c.l.b16 %v1100
        %v1119 = vunpack.c.l.b16 %v1101
        %v1120 = vpack.c.b16 %v1113, %v1112
        %v1121 = vpack.c.b16 %v1115, %v1114
        %v1122 = vpack.c.b16 %v1117, %v1116
        %v1123 = vpack.c.b16 %v1119, %v1118
        %v1125 = vsel %vm210, %v1120, 0
        %v1128 = vsel %vm210, %v1121, 0
        %v1131 = vsel %vm210, %v1122, 0
        %v1134 = vsel %vm210, %v1123, 0
        %v1137 = vsel %vm223, %v1103, 0
        %1139 = vmatprep.subr.bf16.mxu0 0
        %1140 = vmatpush1.bf16.msra.mxu0 %v1137
        %1141 = vmatprep.subr.bf16.mxu0 0
        %1142 = vmatpush1.bf16.msra.mxu0 0
        %1143 = vmatprep.subr.bf16.mxu0 0
        %1144 = vmatpush1.bf16.msra.mxu0 0
        %1145 = vmatprep.subr.bf16.mxu0 0
        %1146 = vmatpush1.bf16.msra.mxu0 0
        %1147 = vmatprep.subr.bf16.mxu0 0
        %1148 = vmatpush1.bf16.msra.mxu0 0
        %1149 = vmatprep.subr.bf16.mxu0 0
        %1150 = vmatpush1.bf16.msra.mxu0 0
        %1151 = vmatprep.subr.bf16.mxu0 0
        %1152 = vmatpush1.bf16.msra.mxu0 0
        %1153 = vmatprep.subr.bf16.mxu0 0
        %1154 = vmatpush1.bf16.msra.mxu0 0
        %1155 = vmatprep.subr.bf16.mxu0 0
        %1156 = vmatpush1.bf16.msra.mxu0 0
        %1157 = vmatprep.subr.bf16.mxu0 0
        %1158 = vmatpush1.bf16.msra.mxu0 0
        %1159 = vmatprep.subr.bf16.mxu0 0
        %1160 = vmatpush1.bf16.msra.mxu0 0
        %1161 = vmatprep.subr.bf16.mxu0 0
        %1162 = vmatpush1.bf16.msra.mxu0 0
        %1163 = vmatprep.subr.bf16.mxu0 0
        %1164 = vmatpush1.bf16.msra.mxu0 0
        %1165 = vmatprep.subr.bf16.mxu0 0
        %1166 = vmatpush1.bf16.msra.mxu0 0
        %1167 = vmatprep.subr.bf16.mxu0 0
        %1168 = vmatpush1.bf16.msra.mxu0 0
        %1169 = vmatprep.subr.bf16.mxu0 0
        %1170 = vmatpush1.bf16.msra.mxu0 0
        %1171 = vmatprep.mubr.bf16.mxu0 0
        %1172 = vmatmul.mubr.bf16.gmra.mrb[0].mxu0 %v1125
        %v1173 = vpop.f32.mrb[0].mxu0
        %v1174 = vadd.f32 0.0, %v1173
        %v1175 = vpop.f32.mrb[0].mxu0
        %v1176 = vpop.f32.mrb[0].mxu0
        %v1177 = vadd.f32 0.0, %v1176
        %v1178 = vpop.f32.mrb[0].mxu0
        %1179 = vmatprep.mubr.bf16.mxu0 0
        %1180 = vmatmul.mubr.bf16.gmra.mrb[0].mxu0 %v1128
        %v1181 = vpop.f32.mrb[0].mxu0
        %v1182 = vadd.f32 0.0, %v1181
        %v1183 = vpop.f32.mrb[0].mxu0
        %v1184 = vpop.f32.mrb[0].mxu0
        %v1185 = vadd.f32 0.0, %v1184
        %v1186 = vpop.f32.mrb[0].mxu0
        %1187 = vmatprep.mubr.bf16.mxu0 0
        %1188 = vmatmul.mubr.bf16.gmra.mrb[0].mxu0 %v1131
        %v1189 = vpop.f32.mrb[0].mxu0
        %v1190 = vadd.f32 0.0, %v1189
        %v1191 = vpop.f32.mrb[0].mxu0
        %v1192 = vpop.f32.mrb[0].mxu0
        %v1193 = vadd.f32 0.0, %v1192
        %v1194 = vpop.f32.mrb[0].mxu0
        %1195 = vmatprep.mubr.bf16.mxu0 0
        %1196 = vmatmul.mubr.bf16.gmra.mrb[0].mxu0 %v1134
        %v1197 = vpop.f32.mrb[0].mxu0
        %v1198 = vadd.f32 0.0, %v1197
        %v1199 = vpop.f32.mrb[0].mxu0
        %v1200 = vpop.f32.mrb[0].mxu0
        %v1201 = vadd.f32 0.0, %v1200
        %v1202 = vpop.f32.mrb[0].mxu0
        %1203 = vdwg.mxu0
        %v1204 = vadd.f32 %v1085, %v1174
        %v1205 = vadd.f32 %v1086, %v1177
        %v1206 = vadd.f32 %v1087, %v1182
        %v1207 = vadd.f32 %v1088, %v1185
        %v1208 = vadd.f32 %v1089, %v1190
        %v1209 = vadd.f32 %v1090, %v1193
        %v1210 = vadd.f32 %v1091, %v1198
        %v1211 = vadd.f32 %v1092, %v1201
        %s1212 = scalar_lea.vmem %s168, 80
        %v1213 = vld [vmem:[%s1212] sm:$0xf]
        %v1214 = vld [vmem:[%s1212 + $0x8] sm:$0xf]
        %v1215 = vld [vmem:[%s1212 + $0x10] sm:$0xf]
        %v1216 = vld [vmem:[%s1212 + $0x18] sm:$0xf]
        %v1217 = vld [vmem:[%s1212 + $0x20] sm:$0xf]
        %v1218 = vld [vmem:[%s1212 + $0x28] sm:$0xf]
        %v1219 = vld [vmem:[%s1212 + $0x30] sm:$0xf]
        %v1220 = vld [vmem:[%s1212 + $0x38] sm:$0xf]
        %s1221 = scalar_lea.vmem %s1, 14
        %v1222 = vld [vmem:[%s1221] sm:$0x3]
        %v1231 = vunpack.c.l.b16 %v1213
        %v1232 = vunpack.c.l.b16 %v1214
        %v1233 = vunpack.c.l.b16 %v1215
        %v1234 = vunpack.c.l.b16 %v1216
        %v1235 = vunpack.c.l.b16 %v1217
        %v1236 = vunpack.c.l.b16 %v1218
        %v1237 = vunpack.c.l.b16 %v1219
        %v1238 = vunpack.c.l.b16 %v1220
        %v1239 = vpack.c.b16 %v1232, %v1231
        %v1240 = vpack.c.b16 %v1234, %v1233
        %v1241 = vpack.c.b16 %v1236, %v1235
        %v1242 = vpack.c.b16 %v1238, %v1237
        %v1244 = vsel %vm210, %v1239, 0
        %v1247 = vsel %vm210, %v1240, 0
        %v1250 = vsel %vm210, %v1241, 0
        %v1253 = vsel %vm210, %v1242, 0
        %v1256 = vsel %vm223, %v1222, 0
        %1258 = vmatprep.subr.bf16.mxu0 0
        %1259 = vmatpush1.bf16.msra.mxu0 %v1256
        %1260 = vmatprep.subr.bf16.mxu0 0
        %1261 = vmatpush1.bf16.msra.mxu0 0
        %1262 = vmatprep.subr.bf16.mxu0 0
        %1263 = vmatpush1.bf16.msra.mxu0 0
        %1264 = vmatprep.subr.bf16.mxu0 0
        %1265 = vmatpush1.bf16.msra.mxu0 0
        %1266 = vmatprep.subr.bf16.mxu0 0
        %1267 = vmatpush1.bf16.msra.mxu0 0
        %1268 = vmatprep.subr.bf16.mxu0 0
        %1269 = vmatpush1.bf16.msra.mxu0 0
        %1270 = vmatprep.subr.bf16.mxu0 0
        %1271 = vmatpush1.bf16.msra.mxu0 0
        %1272 = vmatprep.subr.bf16.mxu0 0
        %1273 = vmatpush1.bf16.msra.mxu0 0
        %1274 = vmatprep.subr.bf16.mxu0 0
        %1275 = vmatpush1.bf16.msra.mxu0 0
        %1276 = vmatprep.subr.bf16.mxu0 0
        %1277 = vmatpush1.bf16.msra.mxu0 0
        %1278 = vmatprep.subr.bf16.mxu0 0
        %1279 = vmatpush1.bf16.msra.mxu0 0
        %1280 = vmatprep.subr.bf16.mxu0 0
        %1281 = vmatpush1.bf16.msra.mxu0 0
        %1282 = vmatprep.subr.bf16.mxu0 0
        %1283 = vmatpush1.bf16.msra.mxu0 0
        %1284 = vmatprep.subr.bf16.mxu0 0
        %1285 = vmatpush1.bf16.msra.mxu0 0
        %1286 = vmatprep.subr.bf16.mxu0 0
        %1287 = vmatpush1.bf16.msra.mxu0 0
        %1288 = vmatprep.subr.bf16.mxu0 0
        %1289 = vmatpush1.bf16.msra.mxu0 0
        %1290 = vmatprep.mubr.bf16.mxu0 0
        %1291 = vmatmul.mubr.bf16.gmra.mrb[0].mxu0 %v1244
        %v1292 = vpop.f32.mrb[0].mxu0
        %v1293 = vadd.f32 0.0, %v1292
        %v1294 = vpop.f32.mrb[0].mxu0
        %v1295 = vpop.f32.mrb[0].mxu0
        %v1296 = vadd.f32 0.0, %v1295
        %v1297 = vpop.f32.mrb[0].mxu0
        %1298 = vmatprep.mubr.bf16.mxu0 0
        %1299 = vmatmul.mubr.bf16.gmra.mrb[0].mxu0 %v1247
        %v1300 = vpop.f32.mrb[0].mxu0
        %v1301 = vadd.f32 0.0, %v1300
        %v1302 = vpop.f32.mrb[0].mxu0
        %v1303 = vpop.f32.mrb[0].mxu0
        %v1304 = vadd.f32 0.0, %v1303
        %v1305 = vpop.f32.mrb[0].mxu0
        %1306 = vmatprep.mubr.bf16.mxu0 0
        %1307 = vmatmul.mubr.bf16.gmra.mrb[0].mxu0 %v1250
        %v1308 = vpop.f32.mrb[0].mxu0
        %v1309 = vadd.f32 0.0, %v1308
        %v1310 = vpop.f32.mrb[0].mxu0
        %v1311 = vpop.f32.mrb[0].mxu0
        %v1312 = vadd.f32 0.0, %v1311
        %v1313 = vpop.f32.mrb[0].mxu0
        %1314 = vmatprep.mubr.bf16.mxu0 0
        %1315 = vmatmul.mubr.bf16.gmra.mrb[0].mxu0 %v1253
        %v1316 = vpop.f32.mrb[0].mxu0
        %v1317 = vadd.f32 0.0, %v1316
        %v1318 = vpop.f32.mrb[0].mxu0
        %v1319 = vpop.f32.mrb[0].mxu0
        %v1320 = vadd.f32 0.0, %v1319
        %v1321 = vpop.f32.mrb[0].mxu0
        %1322 = vdwg.mxu0
        %v1323 = vadd.f32 %v1204, %v1293
        %v1324 = vadd.f32 %v1205, %v1296
        %v1325 = vadd.f32 %v1206, %v1301
        %v1326 = vadd.f32 %v1207, %v1304
        %v1327 = vadd.f32 %v1208, %v1309
        %v1328 = vadd.f32 %v1209, %v1312
        %v1329 = vadd.f32 %v1210, %v1317
        %v1330 = vadd.f32 %v1211, %v1320
        %v1331 = vld [vmem:[%s1093] sm:$0xf]
        %v1332 = vld [vmem:[%s1093 + $0x4] sm:$0x1]
        %v1333 = vld [vmem:[%s1093 + $0x8] sm:$0xf]
        %v1334 = vld [vmem:[%s1093 + $0xc] sm:$0x1]
        %v1335 = vld [vmem:[%s1093 + $0x10] sm:$0xf]
        %v1336 = vld [vmem:[%s1093 + $0x14] sm:$0x1]
        %v1337 = vld [vmem:[%s1093 + $0x18] sm:$0xf]
        %v1338 = vld [vmem:[%s1093 + $0x1c] sm:$0x1]
        %v1339 = vld [vmem:[%s1093 + $0x20] sm:$0xf]
        %v1340 = vld [vmem:[%s1093 + $0x24] sm:$0x1]
        %v1341 = vld [vmem:[%s1093 + $0x28] sm:$0xf]
        %v1342 = vld [vmem:[%s1093 + $0x2c] sm:$0x1]
        %v1343 = vld [vmem:[%s1093 + $0x30] sm:$0xf]
        %v1344 = vld [vmem:[%s1093 + $0x34] sm:$0x1]
        %v1345 = vld [vmem:[%s1093 + $0x38] sm:$0xf]
        %v1346 = vld [vmem:[%s1093 + $0x3c] sm:$0x1]
        %v1348 = vshrl.u32 %v1331, 16
        %v1350 = vrot.slane %v1348, 4
        %v1351 = vshll.u32 %v1331, 16
        %v1353 = vrot.slane %v1351, 5
        %v1354 = vor.u32 %v1350, %v1353
        %v1355 = vrot.slane %v1354, 4
        %v1357 = vshll.u32 %v1332, 16
        %v1359 = vrot.slane %v1357, 5
        %v1360 = vsel %vm410, %v1355, %v1359
        %v1362 = vshrl.u32 %v1333, 16
        %v1364 = vrot.slane %v1362, 4
        %v1365 = vshll.u32 %v1333, 16
        %v1367 = vrot.slane %v1365, 5
        %v1368 = vor.u32 %v1364, %v1367
        %v1369 = vrot.slane %v1368, 4
        %v1371 = vshll.u32 %v1334, 16
        %v1373 = vrot.slane %v1371, 5
        %v1374 = vsel %vm410, %v1369, %v1373
        %v1376 = vshrl.u32 %v1335, 16
        %v1378 = vrot.slane %v1376, 4
        %v1379 = vshll.u32 %v1335, 16
        %v1381 = vrot.slane %v1379, 5
        %v1382 = vor.u32 %v1378, %v1381
        %v1383 = vrot.slane %v1382, 4
        %v1385 = vshll.u32 %v1336, 16
        %v1387 = vrot.slane %v1385, 5
        %v1388 = vsel %vm410, %v1383, %v1387
        %v1390 = vshrl.u32 %v1337, 16
        %v1392 = vrot.slane %v1390, 4
        %v1393 = vshll.u32 %v1337, 16
        %v1395 = vrot.slane %v1393, 5
        %v1396 = vor.u32 %v1392, %v1395
        %v1397 = vrot.slane %v1396, 4
        %v1399 = vshll.u32 %v1338, 16
        %v1401 = vrot.slane %v1399, 5
        %v1402 = vsel %vm410, %v1397, %v1401
        %v1404 = vshrl.u32 %v1339, 16
        %v1406 = vrot.slane %v1404, 4
        %v1407 = vshll.u32 %v1339, 16
        %v1409 = vrot.slane %v1407, 5
        %v1410 = vor.u32 %v1406, %v1409
        %v1411 = vrot.slane %v1410, 4
        %v1413 = vshll.u32 %v1340, 16
        %v1415 = vrot.slane %v1413, 5
        %v1416 = vsel %vm410, %v1411, %v1415
        %v1418 = vshrl.u32 %v1341, 16
        %v1420 = vrot.slane %v1418, 4
        %v1421 = vshll.u32 %v1341, 16
        %v1423 = vrot.slane %v1421, 5
        %v1424 = vor.u32 %v1420, %v1423
        %v1425 = vrot.slane %v1424, 4
        %v1427 = vshll.u32 %v1342, 16
        %v1429 = vrot.slane %v1427, 5
        %v1430 = vsel %vm410, %v1425, %v1429
        %v1432 = vshrl.u32 %v1343, 16
        %v1434 = vrot.slane %v1432, 4
        %v1435 = vshll.u32 %v1343, 16
        %v1437 = vrot.slane %v1435, 5
        %v1438 = vor.u32 %v1434, %v1437
        %v1439 = vrot.slane %v1438, 4
        %v1441 = vshll.u32 %v1344, 16
        %v1443 = vrot.slane %v1441, 5
        %v1444 = vsel %vm410, %v1439, %v1443
        %v1446 = vshrl.u32 %v1345, 16
        %v1448 = vrot.slane %v1446, 4
        %v1449 = vshll.u32 %v1345, 16
        %v1451 = vrot.slane %v1449, 5
        %v1452 = vor.u32 %v1448, %v1451
        %v1453 = vrot.slane %v1452, 4
        %v1455 = vshll.u32 %v1346, 16
        %v1457 = vrot.slane %v1455, 5
        %v1458 = vsel %vm410, %v1453, %v1457
        %s1459 = scalar_lea.vmem %s1, 16
        %v1460 = vld [vmem:[%s1459] sm:$0x3]
        %v1461 = vunpack.c.l.b16 %v1360
        %v1462 = vunpack.c.l.b16 %v1374
        %v1463 = vunpack.c.l.b16 %v1388
        %v1464 = vunpack.c.l.b16 %v1402
        %v1465 = vunpack.c.l.b16 %v1416
        %v1466 = vunpack.c.l.b16 %v1430
        %v1467 = vunpack.c.l.b16 %v1444
        %v1468 = vunpack.c.l.b16 %v1458
        %v1469 = vpack.c.b16 %v1462, %v1461
        %v1470 = vpack.c.b16 %v1464, %v1463
        %v1471 = vpack.c.b16 %v1466, %v1465
        %v1472 = vpack.c.b16 %v1468, %v1467
        %v1474 = vsel %vm210, %v1469, 0
        %v1477 = vsel %vm210, %v1470, 0
        %v1480 = vsel %vm210, %v1471, 0
        %v1483 = vsel %vm210, %v1472, 0
        %v1486 = vsel %vm223, %v1460, 0
        %1488 = vmatprep.subr.bf16.mxu0 0
        %1489 = vmatpush1.bf16.msra.mxu0 %v1486
        %1490 = vmatprep.subr.bf16.mxu0 0
        %1491 = vmatpush1.bf16.msra.mxu0 0
        %1492 = vmatprep.subr.bf16.mxu0 0
        %1493 = vmatpush1.bf16.msra.mxu0 0
        %1494 = vmatprep.subr.bf16.mxu0 0
        %1495 = vmatpush1.bf16.msra.mxu0 0
        %1496 = vmatprep.subr.bf16.mxu0 0
        %1497 = vmatpush1.bf16.msra.mxu0 0
        %1498 = vmatprep.subr.bf16.mxu0 0
        %1499 = vmatpush1.bf16.msra.mxu0 0
        %1500 = vmatprep.subr.bf16.mxu0 0
        %1501 = vmatpush1.bf16.msra.mxu0 0
        %1502 = vmatprep.subr.bf16.mxu0 0
        %1503 = vmatpush1.bf16.msra.mxu0 0
        %1504 = vmatprep.subr.bf16.mxu0 0
        %1505 = vmatpush1.bf16.msra.mxu0 0
        %1506 = vmatprep.subr.bf16.mxu0 0
        %1507 = vmatpush1.bf16.msra.mxu0 0
        %1508 = vmatprep.subr.bf16.mxu0 0
        %1509 = vmatpush1.bf16.msra.mxu0 0
        %1510 = vmatprep.subr.bf16.mxu0 0
        %1511 = vmatpush1.bf16.msra.mxu0 0
        %1512 = vmatprep.subr.bf16.mxu0 0
        %1513 = vmatpush1.bf16.msra.mxu0 0
        %1514 = vmatprep.subr.bf16.mxu0 0
        %1515 = vmatpush1.bf16.msra.mxu0 0
        %1516 = vmatprep.subr.bf16.mxu0 0
        %1517 = vmatpush1.bf16.msra.mxu0 0
        %1518 = vmatprep.subr.bf16.mxu0 0
        %1519 = vmatpush1.bf16.msra.mxu0 0
        %1520 = vmatprep.mubr.bf16.mxu0 0
        %1521 = vmatmul.mubr.bf16.gmra.mrb[0].mxu0 %v1474
        %v1522 = vpop.f32.mrb[0].mxu0
        %v1523 = vadd.f32 0.0, %v1522
        %v1524 = vpop.f32.mrb[0].mxu0
        %v1525 = vpop.f32.mrb[0].mxu0
        %v1526 = vadd.f32 0.0, %v1525
        %v1527 = vpop.f32.mrb[0].mxu0
        %1528 = vmatprep.mubr.bf16.mxu0 0
        %1529 = vmatmul.mubr.bf16.gmra.mrb[0].mxu0 %v1477
        %v1530 = vpop.f32.mrb[0].mxu0
        %v1531 = vadd.f32 0.0, %v1530
        %v1532 = vpop.f32.mrb[0].mxu0
        %v1533 = vpop.f32.mrb[0].mxu0
        %v1534 = vadd.f32 0.0, %v1533
        %v1535 = vpop.f32.mrb[0].mxu0
        %1536 = vmatprep.mubr.bf16.mxu0 0
        %1537 = vmatmul.mubr.bf16.gmra.mrb[0].mxu0 %v1480
        %v1538 = vpop.f32.mrb[0].mxu0
        %v1539 = vadd.f32 0.0, %v1538
        %v1540 = vpop.f32.mrb[0].mxu0
        %v1541 = vpop.f32.mrb[0].mxu0
        %v1542 = vadd.f32 0.0, %v1541
        %v1543 = vpop.f32.mrb[0].mxu0
        %1544 = vmatprep.mubr.bf16.mxu0 0
        %1545 = vmatmul.mubr.bf16.gmra.mrb[0].mxu0 %v1483
        %v1546 = vpop.f32.mrb[0].mxu0
        %v1547 = vadd.f32 0.0, %v1546
        %v1548 = vpop.f32.mrb[0].mxu0
        %v1549 = vpop.f32.mrb[0].mxu0
        %v1550 = vadd.f32 0.0, %v1549
        %v1551 = vpop.f32.mrb[0].mxu0
        %1552 = vdwg.mxu0
        %v1553 = vadd.f32 %v1323, %v1523
        %v1554 = vadd.f32 %v1324, %v1526
        %v1555 = vadd.f32 %v1325, %v1531
        %v1556 = vadd.f32 %v1326, %v1534
        %v1557 = vadd.f32 %v1327, %v1539
        %v1558 = vadd.f32 %v1328, %v1542
        %v1559 = vadd.f32 %v1329, %v1547
        %v1560 = vadd.f32 %v1330, %v1550
        %v1561 = vld [vmem:[%s2] sm:$0x1]
        %v1563 = vlaneseq
        %v1564 = vshrl.u32 %v1563, 7
        %v1565 = vsub.s32 0, %v1564
        %v1566 = vrot.slane %v1561, %v1565
        %v1568 = vadd.f32 %v1553, %v1566
        %v1569 = vadd.f32 %v1554, %v1566
        %v1570 = vadd.f32 %v1555, %v1566
        %v1571 = vadd.f32 %v1556, %v1566
        %v1572 = vadd.f32 %v1557, %v1566
        %v1573 = vadd.f32 %v1558, %v1566
        %v1574 = vadd.f32 %v1559, %v1566
        %v1575 = vadd.f32 %v1560, %v1566
        %v1576 = vmax.f32 %v1568, 0.0
        %v1577 = vmax.f32 %v1569, 0.0
        %v1578 = vmax.f32 %v1570, 0.0
        %v1579 = vmax.f32 %v1571, 0.0
        %v1580 = vmax.f32 %v1572, 0.0
        %v1581 = vmax.f32 %v1573, 0.0
        %v1582 = vmax.f32 %v1574, 0.0
        %v1583 = vmax.f32 %v1575, 0.0
        %v1584 = vpack.c.bf16 %v1577, %v1576
        %v1585 = vpack.c.bf16 %v1579, %v1578
        %v1586 = vpack.c.bf16 %v1581, %v1580
        %v1587 = vpack.c.bf16 %v1583, %v1582
        %v1592 = vunpack.c.l.b16 %v1584
        %v1593 = vunpack.c.h.b16 %v1584
        %v1594 = vunpack.c.l.b16 %v1585
        %v1595 = vunpack.c.h.b16 %v1585
        %v1596 = vunpack.c.l.b16 %v1586
        %v1597 = vunpack.c.h.b16 %v1586
        %v1598 = vunpack.c.l.b16 %v1587
        %v1599 = vunpack.c.h.b16 %v1587
        %v1600 = vpack.c.b16 %v1592, %v1592
        %v1601 = vpack.c.b16 %v1593, %v1593
        %v1602 = vpack.c.b16 %v1594, %v1594
        %v1603 = vpack.c.b16 %v1595, %v1595
        %v1604 = vpack.c.b16 %v1596, %v1596
        %v1605 = vpack.c.b16 %v1597, %v1597
        %v1606 = vpack.c.b16 %v1598, %v1598
        %v1607 = vpack.c.b16 %v1599, %v1599
        %1616 = vst [vmem:[%s163] sm:$0xf] %v1600
        %1617 = vst [vmem:[%s163 + $0x4] sm:$0xf] %v1601
        %1618 = vst [vmem:[%s163 + $0x8] sm:$0xf] %v1602
        %1619 = vst [vmem:[%s163 + $0xc] sm:$0xf] %v1603
        %1620 = vst [vmem:[%s163 + $0x10] sm:$0xf] %v1604
        %1621 = vst [vmem:[%s163 + $0x14] sm:$0xf] %v1605
        %1622 = vst [vmem:[%s163 + $0x18] sm:$0xf] %v1606
        %1623 = vst [vmem:[%s163 + $0x1c] sm:$0xf] %v1607
        %s1624 = sand.u32 %s93, 1
        %s1625 = scalar_lea.sflag [#allocation3], %s1624
        %s1626 = sand.u32 %s93, 1
        %s1627 = smul.addr %s1626, 32
        %s1628 = scalar_lea.vmem [#allocation2], %s1627
        // Predicated region
        $region33: #{tpu_custom_call.1} parent=31 // pred_check
          %p1629 = pneg %p103
        $region34: #{tpu_custom_call.1} parent=31 // pred_check_branch
          %1631 = sbr.rel (%p1629) target = $region36
        $region35: #{tpu_custom_call.1} parent=31 // pred_region
          %s1633 = ssub.s32 512, 512
          %1634 = vsyncadd %s1625, %s1633
          %s1635 = smul.addr %s17, 8
          %s1636 = smul.addr %s1635, 64
          %s1637 = scalar_lea.hbm %s3, %s1636
          %s1638 = sshll.u32 %s1628, 4
          %s1639 = int_to_ptr.vmem [resolvable:$true] %s1638
          %1644 = dma.vmem_to_hbm [thread:$0]  %s1639, 512, %s1637, %s1625, 64, 64, 4
        $region36: #{tpu_custom_call.1} parent=31 // pred_fallthru
          _
      $region32: #{tpu_custom_call.1} parent=5 // pred_fallthru
        _
      %p1645 = scmp.le.s32.totalorder 2, %s12
      // Predicated region
      $region37: #{tpu_custom_call.1} parent=5 // pred_check
        %p1646 = pneg %p1645
      $region38: #{tpu_custom_call.1} parent=5 // pred_check_branch
        %1648 = sbr.rel (%p1646) target = $region40
      $region39: #{tpu_custom_call.1} parent=5 // pred_region
        %s1649 = ssub.s32 %s12, 2
        // Predicated region
        $region41: #{tpu_custom_call.1} parent=39 // pred_check
          %p1650 = pneg %p109
        $region42: #{tpu_custom_call.1} parent=39 // pred_check_branch
          %1652 = sbr.rel (%p1650) target = $region44
        $region43: #{tpu_custom_call.1} parent=39 // pred_region
          %s1653 = sand.u32 %s94, 1
          %s1654 = scalar_lea.sflag [#allocation3], %s1653
          %s1655 = sand.u32 %s94, 1
          %s1656 = smul.addr %s1655, 32
          %s1657 = scalar_lea.vmem [#allocation2], %s1656
          %1658 = dma.done %s1654, 512
        $region44: #{tpu_custom_call.1} parent=39 // pred_fallthru
          _
      $region40: #{tpu_custom_call.1} parent=5 // pred_fallthru
        _
    $region6: #{tpu_custom_call.1} parent=1 // loop_footer
      %s16 = sadd.s32 1, %s12
    $region7: #{tpu_custom_call.1} parent=1 // loop_footer_branch
      %11 = sbr.rel target = $region3
    $region8: #{tpu_custom_call.1} parent=1 // loop_exit
      _
    %1659 = vsyncpa [#allocation3], 1
    %s1660 = scalar_lea.sflag [#allocation3], 1
    %1661 = vsyncpa %s1660, 1

</llo_original>
